<compile_context>
chip_gen: v7x
topology: tpu7x:2x2x1
jax: 0.10.0
libtpu: 0.0.40
codegen_flags: <defaults>
</compile_context>

<pallas_src>
import jax
import jax.numpy as jnp
from jax import lax
from jax.experimental import pallas as pl
from jax.experimental.pallas import tpu as pltpu

# ---- problem sizes (small, consistent with the module) ----
B = 2            # batch
DIM_CLIP = 32    # dim_clip
D = 64           # dim_embedding  (divisible by 8 heads)
H = 8            # num_heads (hard-coded in TransformerMapper)
DH = D // H      # head dim
CL = 4           # clip_length
P = 4            # prefix_length
N = CL + P       # transformer sequence length
L = 2            # num_layers (default is 8; small example uses 2)
HID = int(D * 2.0)   # mlp_ratio = 2.0
EPS = 1e-5
SCALE = DH ** (-0.5)
ROWS = B * N     # 16 slab rows, token-major: row = t*B + b
HR = H * ROWS    # 128: head-major stacked score rows

# lane offsets inside the packed per-layer vector slab vecs: (L, VEC_W)
_O_N1W, _O_N1B, _O_PB, _O_N2W, _O_N2B = 0, D, 2 * D, 3 * D, 4 * D
_O_F1B = 5 * D
_O_F2B = 5 * D + HID
VEC_W = 5 * D + HID + D          # 512

# lane offsets inside the packed per-layer (D, .) weight slab bigw: (L, D, BIGW_W)
_O_QKV, _O_PW, _O_F1W = 0, 3 * D, 4 * D
BIGW_W = 4 * D + HID             # 384


def _layer_norm(h, w, b):
    mu = jnp.mean(h, axis=-1, keepdims=True)
    var = jnp.mean((h - mu) ** 2, axis=-1, keepdims=True)
    return (h - mu) * lax.rsqrt(var + EPS) * w + b


def mapper_kernel(x_ref, lwb_ref, pfx_ref, masks_ref, vecs_ref, bigw_ref,
                  f2w_ref, o_ref):
    x = x_ref[...]                              # (B, DIM_CLIP)
    hmask = masks_ref[:, 0:D]                   # (HR, D)   block-diag head mask
    cmask = masks_ref[:, D:D + ROWS]            # (HR, ROWS) same-batch 0/1 mask

    # clip tokens: ONE fused matmul over all CL tokens + flattened bias row.
    y = (jnp.dot(x, lwb_ref[0:DIM_CLIP, :], preferred_element_type=jnp.float32)
         + lwb_ref[DIM_CLIP:DIM_CLIP + 1, :])   # (B, CL*D)
    blocks = [y[:, c * D:(c + 1) * D] for c in range(CL)]   # token-major packing
    blocks.append(pfx_ref[...])                 # (P*B, D), pre-repeated per batch
    seq = jnp.concatenate(blocks, axis=0)       # (ROWS, D), row = t*B + b

    # TODO(synk): for the default num_layers=8 keep this loop unrolled (or use
    # lax.fori_loop(..., unroll=True)) so the LLO scheduler keeps visibility.
    for l in range(L):
        # packed per-layer vectors (each (1, width), broadcast against the slab)
        n1w = vecs_ref[l:l + 1, _O_N1W:_O_N1W + D]
        n1b = vecs_ref[l:l + 1, _O_N1B:_O_N1B + D]
        pb = vecs_ref[l:l + 1, _O_PB:_O_PB + D]
        n2w = vecs_ref[l:l + 1, _O_N2W:_O_N2W + D]
        n2b = vecs_ref[l:l + 1, _O_N2B:_O_N2B + D]
        f1b = vecs_ref[l:l + 1, _O_F1B:_O_F1B + HID]
        f2b = vecs_ref[l:l + 1, _O_F2B:_O_F2B + D]
        wl = bigw_ref.at[l]                     # (D, BIGW_W) ref view, zero cost

        # ---------- attention block: seq = seq + attn(norm1(seq)) ----------
        h1 = _layer_norm(seq, n1w, n1b)
        # fused q/k/v projection; the q columns were pre-scaled by DH**-0.5.
        qkv = jnp.dot(h1, wl[:, _O_QKV:_O_QKV + 3 * D],
                      preferred_element_type=jnp.float32)        # (ROWS, 3D)
        q = qkv[:, 0:D]
        k = qkv[:, D:2 * D]
        v = qkv[:, 2 * D:3 * D]

        # all 8 heads in ONE score matmul: tile q along sublanes, keep only each
        # head's own columns via the block-diagonal mask, contract lane dims.
        q_t = jnp.concatenate([q] * H, axis=0) * hmask           # (HR, D)
        s = lax.dot_general(q_t, k, (((1,), (1,)), ((), ())),
                            preferred_element_type=jnp.float32)  # (HR, ROWS)

        # softmax: scores are O(1) in f32 -> skip the row-max subtraction; kill
        # cross-batch entries multiplicatively instead of with an additive -inf.
        e = jnp.exp(s) * cmask
        p = e * pl.reciprocal(jnp.sum(e, axis=-1, keepdims=True), approx=True)

        # all 8 heads in ONE P@V matmul, then head mask + aligned sublane-block sum.
        pvm = jnp.dot(p, v, preferred_element_type=jnp.float32) * hmask  # (HR, D)
        att = pvm[0:ROWS, :]
        for hh in range(1, H):
            att = att + pvm[hh * ROWS:(hh + 1) * ROWS, :]                # (ROWS, D)

        att = (jnp.dot(att, wl[:, _O_PW:_O_PW + D],
                       preferred_element_type=jnp.float32) + pb)
        seq = seq + att

        # ---------- mlp block: seq = seq + mlp(norm2(seq)) ----------
        h2 = _layer_norm(seq, n2w, n2b)
        m = (jnp.dot(h2, wl[:, _O_F1W:_O_F1W + HID],
                     preferred_element_type=jnp.float32) + f1b)
        m = jnp.maximum(m, 0.0)                                  # relu
        m = (jnp.dot(m, f2w_ref[l], preferred_element_type=jnp.float32) + f2b)
        seq = seq + m

    # full-slab store; the [CL:] slice happens in the wrapper (free layout).
    o_ref[...] = seq


def transformer_mapper(x, params):
    """x: (B, DIM_CLIP) float32 -> (B, P, D) float32."""
    (lw, lb2d, pfx, n1w, n1b, qw, kvw, pw, pb,
     n2w, n2b, f1w, f1b, f2w, f2b) = params

    # --- host-side packing (one-time weight preprocessing / free layout) ---
    lwb = jnp.concatenate([lw, lb2d.reshape(1, CL * D)], axis=0)   # (DIM_CLIP+1, CL*D)
    pfx_rep = jnp.repeat(pfx, B, axis=0)                           # (P*B, D), row p*B+b

    # fused q/k/v weights with the attention scale folded into the q columns,
    # then packed with the project and fc1 weights into one (L, D, 384) slab.
    qkvw = jnp.concatenate([qw * SCALE, kvw], axis=-1)             # (L, D, 3D)
    bigw = jnp.concatenate([qkvw, pw, f1w], axis=-1)               # (L, D, BIGW_W)
    vecs = jnp.concatenate([n1w, n1b, pb, n2w, n2b, f1b, f2b],
                           axis=-1)                                # (L, VEC_W)

    # block-diagonal head mask (HR, D) || same-batch mask (HR, ROWS)
    head_of_row = jnp.arange(HR, dtype=jnp.int32) // ROWS
    head_of_col = jnp.arange(D, dtype=jnp.int32) // DH
    hmask = (head_of_row[:, None] == head_of_col[None, :]).astype(jnp.float32)
    rpar = jnp.arange(HR, dtype=jnp.int32) % B
    cpar = jnp.arange(ROWS, dtype=jnp.int32) % B
    cmask = (rpar[:, None] == cpar[None, :]).astype(jnp.float32)
    masks = jnp.concatenate([hmask, cmask], axis=-1)               # (HR, D+ROWS)

    ins = (x, lwb, pfx_rep, masks, vecs, bigw, f2w)

    def full_spec(a):
        nd = a.ndim
        return pl.BlockSpec(a.shape, lambda i, _nd=nd: (0,) * _nd)

    # TODO(synk): on v7x (2 TensorCores) a grid=(B,) "parallel" per-batch split
    # could use the second core; not done here since per-core launch overhead
    # likely dominates at these sizes and it would regress v5e/v6e (1 TC).
    out_slab = pl.pallas_call(
        mapper_kernel,
        out_shape=jax.ShapeDtypeStruct((ROWS, D), jnp.float32),
        grid_spec=pltpu.PrefetchScalarGridSpec(
            num_scalar_prefetch=0,
            grid=(1,),                                             # single step
            in_specs=[full_spec(a) for a in ins],
            out_specs=pl.BlockSpec((ROWS, D), lambda i: (0, 0)),
        ),
        compiler_params=pltpu.CompilerParams(
            dimension_semantics=("arbitrary",)),
    )(*ins)

    # token-major slab (row = t*B + b) -> (B, P, D), dropping the CL clip tokens.
    return out_slab.reshape(N, B, D)[CL:].transpose(1, 0, 2)


# ---------------- pure-JAX reference (mirrors the PyTorch forward) ----------------
def reference(x, params):
    (lw, lb2d, pfx, n1w, n1b, qw, kvw, pw, pb,
     n2w, n2b, f1w, f1b, f2w, f2b) = params
    lb = lb2d.reshape(CL * D)
    clip = (x @ lw + lb).reshape(B, CL, D)
    seq = jnp.concatenate([clip, jnp.broadcast_to(pfx, (B, P, D))], axis=1)

    def ln(h, w, b):
        mu = h.mean(-1, keepdims=True)
        var = ((h - mu) ** 2).mean(-1, keepdims=True)
        return (h - mu) / jnp.sqrt(var + EPS) * w + b

    for l in range(L):
        h1 = ln(seq, n1w[l], n1b[l])
        q = (h1 @ qw[l]).reshape(B, N, H, DH)
        kv = h1 @ kvw[l]
        k = kv[..., :D].reshape(B, N, H, DH)
        v = kv[..., D:].reshape(B, N, H, DH)
        att = jnp.einsum('bnhd,bmhd->bnmh', q, k) * SCALE
        att = jax.nn.softmax(att, axis=2)
        out = jnp.einsum('bnmh,bmhd->bnhd', att, v).reshape(B, N, D)
        out = out @ pw[l] + pb[l]
        seq = seq + out
        h2 = ln(seq, n2w[l], n2b[l])
        m = jnp.maximum(h2 @ f1w[l] + f1b[l], 0.0) @ f2w[l] + f2b[l]
        seq = seq + m
    return seq[:, CL:]


if __name__ == "__main__":
    key = jax.random.PRNGKey(0)
    ks = jax.random.split(key, 16)

    def rnd(k, shape, s=0.05):
        return s * jax.random.normal(k, shape, dtype=jnp.float32)

    # Parameters (deterministic synthetic init; weights stored as (in, out)).
    lw   = rnd(ks[0], (DIM_CLIP, CL * D))            # self.linear weight^T
    lb2d = rnd(ks[1], (CL, D))                       # self.linear bias, as (CL, D)
    pfx  = jax.random.normal(ks[2], (P, D), jnp.float32)  # prefix_const ~ randn
    n1w  = 1.0 + rnd(ks[3], (L, D))                  # norm1 weight
    n1b  = rnd(ks[4], (L, D))                        # norm1 bias
    qw   = rnd(ks[5], (L, D, D))                     # to_queries (no bias)
    kvw  = rnd(ks[6], (L, D, 2 * D))                 # to_keys_values (no bias)
    pw   = rnd(ks[7], (L, D, D))                     # attn project weight^T
    pb   = rnd(ks[8], (L, D))                        # attn project bias
    n2w  = 1.0 + rnd(ks[9], (L, D))                  # norm2 weight
    n2b  = rnd(ks[10], (L, D))                       # norm2 bias
    f1w  = rnd(ks[11], (L, D, HID))                  # mlp fc1 weight^T
    f1b  = rnd(ks[12], (L, HID))                     # mlp fc1 bias
    f2w  = rnd(ks[13], (L, HID, D))                  # mlp fc2 weight^T
    f2b  = rnd(ks[14], (L, D))                       # mlp fc2 bias

    params = (lw, lb2d, pfx, n1w, n1b, qw, kvw, pw, pb,
              n2w, n2b, f1w, f1b, f2w, f2b)

    x = jax.random.normal(ks[15], (B, DIM_CLIP), dtype=jnp.float32)

    out = transformer_mapper(x, params)
    out = jax.block_until_ready(out)

    ref = jax.block_until_ready(reference(x, params))
    assert out.shape == (B, P, D)
    # 2e-3 tolerance to allow the EUP approximate reciprocal in the softmax.
    assert jnp.allclose(out, ref, atol=2e-3, rtol=2e-3), (
        f"max abs err {jnp.max(jnp.abs(out - ref))}")

    # TODO(synk): the `emb_size is not None` branch calls an undefined
    # `self.projector` in the reference module; only the emb_size=None path is modeled.
    print("KERNEL_OK")
</pallas_src>

<mosaic_0001>
module attributes {stable_mosaic.version = 11 : i64} {
  func.func @mapper_kernel(%arg0: i32, %arg1: memref<2x32xf32, #tpu.memory_space<vmem>>, %arg2: memref<33x256xf32, #tpu.memory_space<vmem>>, %arg3: memref<8x64xf32, #tpu.memory_space<vmem>>, %arg4: memref<128x80xf32, #tpu.memory_space<vmem>>, %arg5: memref<2x512xf32, #tpu.memory_space<vmem>>, %arg6: memref<2x64x384xf32, #tpu.memory_space<vmem>>, %arg7: memref<2x128x64xf32, #tpu.memory_space<vmem>>, %arg8: memref<16x64xf32, #tpu.memory_space<vmem>>) attributes {dimension_semantics = [#tpu.dimension_semantics<arbitrary>], iteration_bounds = array<i64: 1>, scalar_prefetch = 0 : i64, scratch_operands = 0 : i64, tpu.core_type = #tpu.core_type<tc>, window_params = [{pipeline_mode = #tpu.pipeline_mode<synchronous>, transform_indices = @transform_0, window_bounds = array<i64: 2, 32>}, {pipeline_mode = #tpu.pipeline_mode<synchronous>, transform_indices = @transform_1, window_bounds = array<i64: 33, 256>}, {pipeline_mode = #tpu.pipeline_mode<synchronous>, transform_indices = @transform_2, window_bounds = array<i64: 8, 64>}, {pipeline_mode = #tpu.pipeline_mode<synchronous>, transform_indices = @transform_3, window_bounds = array<i64: 128, 80>}, {pipeline_mode = #tpu.pipeline_mode<synchronous>, transform_indices = @transform_4, window_bounds = array<i64: 2, 512>}, {pipeline_mode = #tpu.pipeline_mode<synchronous>, transform_indices = @transform_5, window_bounds = array<i64: 2, 64, 384>}, {pipeline_mode = #tpu.pipeline_mode<synchronous>, transform_indices = @transform_6, window_bounds = array<i64: 2, 128, 64>}, {pipeline_mode = #tpu.pipeline_mode<synchronous>, transform_indices = @transform_7, window_bounds = array<i64: 16, 64>}]} {
    %c0 = arith.constant 0 : index
    %c0_0 = arith.constant 0 : index
    %0 = vector.load %arg1[%c0, %c0_0] : memref<2x32xf32, #tpu.memory_space<vmem>>, vector<2x32xf32>
    %c0_1 = arith.constant 0 : index
    %c0_2 = arith.constant 0 : index
    %1 = vector.load %arg4[%c0_1, %c0_2] : memref<128x80xf32, #tpu.memory_space<vmem>>, vector<128x64xf32>
    %c0_3 = arith.constant 0 : index
    %c64 = arith.constant 64 : index
    %2 = vector.load %arg4[%c0_3, %c64] : memref<128x80xf32, #tpu.memory_space<vmem>>, vector<128x16xf32>
    %c0_4 = arith.constant 0 : index
    %c0_5 = arith.constant 0 : index
    %3 = vector.load %arg2[%c0_4, %c0_5] : memref<33x256xf32, #tpu.memory_space<vmem>>, vector<32x256xf32>
    %cst = arith.constant dense<0.000000e+00> : vector<2x256xf32>
    %4 = tpu.matmul %0, %3, %cst {dimension_numbers = #tpu.dot_dimension_numbers<[1], [0], [0], [1], [0, 0, 1, 1], [], []>} : vector<2x32xf32>, vector<32x256xf32>, vector<2x256xf32> -> vector<2x256xf32>
    %c32 = arith.constant 32 : index
    %c0_6 = arith.constant 0 : index
    %5 = vector.load %arg2[%c32, %c0_6] : memref<33x256xf32, #tpu.memory_space<vmem>>, vector<1x256xf32>
    %6 = vector.broadcast %5 : vector<1x256xf32> to vector<2x256xf32>
    %7 = arith.addf %4, %6 : vector<2x256xf32>
    %8 = vector.extract_strided_slice %7 {offsets = [0, 0], sizes = [2, 64], strides = [1, 1]} : vector<2x256xf32> to vector<2x64xf32>
    %9 = vector.extract_strided_slice %7 {offsets = [0, 64], sizes = [2, 64], strides = [1, 1]} : vector<2x256xf32> to vector<2x64xf32>
    %10 = vector.extract_strided_slice %7 {offsets = [0, 128], sizes = [2, 64], strides = [1, 1]} : vector<2x256xf32> to vector<2x64xf32>
    %11 = vector.extract_strided_slice %7 {offsets = [0, 192], sizes = [2, 64], strides = [1, 1]} : vector<2x256xf32> to vector<2x64xf32>
    %c0_7 = arith.constant 0 : index
    %c0_8 = arith.constant 0 : index
    %12 = vector.load %arg3[%c0_7, %c0_8] : memref<8x64xf32, #tpu.memory_space<vmem>>, vector<8x64xf32>
    %13 = tpu.concatenate %8, %9, %10, %11, %12 in 0 : vector<2x64xf32>, vector<2x64xf32>, vector<2x64xf32>, vector<2x64xf32>, vector<8x64xf32> -> vector<16x64xf32>
    %c0_9 = arith.constant 0 : index
    %c0_10 = arith.constant 0 : index
    %14 = vector.load %arg5[%c0_9, %c0_10] : memref<2x512xf32, #tpu.memory_space<vmem>>, vector<1x64xf32>
    %c0_11 = arith.constant 0 : index
    %c64_12 = arith.constant 64 : index
    %15 = vector.load %arg5[%c0_11, %c64_12] : memref<2x512xf32, #tpu.memory_space<vmem>>, vector<1x64xf32>
    %c0_13 = arith.constant 0 : index
    %c128 = arith.constant 128 : index
    %16 = vector.load %arg5[%c0_13, %c128] : memref<2x512xf32, #tpu.memory_space<vmem>>, vector<1x64xf32>
    %c0_14 = arith.constant 0 : index
    %c192 = arith.constant 192 : index
    %17 = vector.load %arg5[%c0_14, %c192] : memref<2x512xf32, #tpu.memory_space<vmem>>, vector<1x64xf32>
    %c0_15 = arith.constant 0 : index
    %c256 = arith.constant 256 : index
    %18 = vector.load %arg5[%c0_15, %c256] : memref<2x512xf32, #tpu.memory_space<vmem>>, vector<1x64xf32>
    %c0_16 = arith.constant 0 : index
    %c320 = arith.constant 320 : index
    %19 = vector.load %arg5[%c0_16, %c320] : memref<2x512xf32, #tpu.memory_space<vmem>>, vector<1x128xf32>
    %c0_17 = arith.constant 0 : index
    %c448 = arith.constant 448 : index
    %20 = vector.load %arg5[%c0_17, %c448] : memref<2x512xf32, #tpu.memory_space<vmem>>, vector<1x64xf32>
    %cst_18 = arith.constant dense<0.000000e+00> : vector<16xf32>
    %21 = vector.multi_reduction <add>, %13, %cst_18 [1] : vector<16x64xf32> to vector<16xf32>
    %22 = vector.shape_cast %21 : vector<16xf32> to vector<16x1xf32>
    %cst_19 = arith.constant 6.400000e+01 : f32
    %23 = vector.broadcast %cst_19 : f32 to vector<16x1xf32>
    %24 = arith.divf %22, %23 : vector<16x1xf32>
    %25 = vector.broadcast %24 : vector<16x1xf32> to vector<16x64xf32>
    %26 = arith.subf %13, %25 : vector<16x64xf32>
    %27 = arith.mulf %26, %26 : vector<16x64xf32>
    %cst_20 = arith.constant dense<0.000000e+00> : vector<16xf32>
    %28 = vector.multi_reduction <add>, %27, %cst_20 [1] : vector<16x64xf32> to vector<16xf32>
    %29 = vector.shape_cast %28 : vector<16xf32> to vector<16x1xf32>
    %cst_21 = arith.constant 6.400000e+01 : f32
    %30 = vector.broadcast %cst_21 : f32 to vector<16x1xf32>
    %31 = arith.divf %29, %30 : vector<16x1xf32>
    %32 = vector.broadcast %24 : vector<16x1xf32> to vector<16x64xf32>
    %33 = arith.subf %13, %32 : vector<16x64xf32>
    %cst_22 = arith.constant 9.99999974E-6 : f32
    %34 = vector.broadcast %cst_22 : f32 to vector<16x1xf32>
    %35 = arith.addf %31, %34 : vector<16x1xf32>
    %36 = math.rsqrt %35 : vector<16x1xf32>
    %37 = vector.broadcast %36 : vector<16x1xf32> to vector<16x64xf32>
    %38 = arith.mulf %33, %37 : vector<16x64xf32>
    %39 = vector.broadcast %14 : vector<1x64xf32> to vector<16x64xf32>
    %40 = arith.mulf %38, %39 : vector<16x64xf32>
    %41 = vector.broadcast %15 : vector<1x64xf32> to vector<16x64xf32>
    %42 = arith.addf %40, %41 : vector<16x64xf32>
    %c0_i32 = arith.constant 0 : i32
    %c0_i32_23 = arith.constant 0 : i32
    %c0_i32_24 = arith.constant 0 : i32
    %43 = tpu.memref_slice %arg6[%c0_i32, %c0_i32_23, %c0_i32_24] : memref<2x64x384xf32, #tpu.memory_space<vmem>> -> memref<1x64x384xf32, #tpu.memory_space<vmem>>
    %44 = tpu.memref_squeeze %43 : memref<1x64x384xf32, #tpu.memory_space<vmem>> -> memref<64x384xf32, #tpu.memory_space<vmem>>
    %c0_25 = arith.constant 0 : index
    %c0_26 = arith.constant 0 : index
    %45 = vector.load %44[%c0_25, %c0_26] : memref<64x384xf32, #tpu.memory_space<vmem>>, vector<64x192xf32>
    %cst_27 = arith.constant dense<0.000000e+00> : vector<16x192xf32>
    %46 = tpu.matmul %42, %45, %cst_27 {dimension_numbers = #tpu.dot_dimension_numbers<[1], [0], [0], [1], [0, 0, 1, 1], [], []>} : vector<16x64xf32>, vector<64x192xf32>, vector<16x192xf32> -> vector<16x192xf32>
    %47 = vector.extract_strided_slice %46 {offsets = [0, 0], sizes = [16, 64], strides = [1, 1]} : vector<16x192xf32> to vector<16x64xf32>
    %48 = vector.extract_strided_slice %46 {offsets = [0, 64], sizes = [16, 64], strides = [1, 1]} : vector<16x192xf32> to vector<16x64xf32>
    %49 = vector.extract_strided_slice %46 {offsets = [0, 128], sizes = [16, 64], strides = [1, 1]} : vector<16x192xf32> to vector<16x64xf32>
    %50 = tpu.concatenate %47, %47, %47, %47, %47, %47, %47, %47 in 0 : vector<16x64xf32>, vector<16x64xf32>, vector<16x64xf32>, vector<16x64xf32>, vector<16x64xf32>, vector<16x64xf32>, vector<16x64xf32>, vector<16x64xf32> -> vector<128x64xf32>
    %51 = arith.mulf %50, %1 : vector<128x64xf32>
    %cst_28 = arith.constant dense<0.000000e+00> : vector<128x16xf32>
    %52 = tpu.matmul %51, %48, %cst_28 {dimension_numbers = #tpu.dot_dimension_numbers<[1], [1], [0], [0], [0, 0, 1, 0], [], []>} : vector<128x64xf32>, vector<16x64xf32>, vector<128x16xf32> -> vector<128x16xf32>
    %53 = math.exp %52 : vector<128x16xf32>
    %54 = arith.mulf %53, %2 : vector<128x16xf32>
    %cst_29 = arith.constant dense<0.000000e+00> : vector<128xf32>
    %55 = vector.multi_reduction <add>, %54, %cst_29 [1] : vector<128x16xf32> to vector<128xf32>
    %56 = vector.shape_cast %55 : vector<128xf32> to vector<128x1xf32>
    %57 = tpu.reciprocal %56 {approx = true} : vector<128x1xf32> -> vector<128x1xf32>
    %58 = vector.broadcast %57 : vector<128x1xf32> to vector<128x16xf32>
    %59 = arith.mulf %54, %58 : vector<128x16xf32>
    %cst_30 = arith.constant dense<0.000000e+00> : vector<128x64xf32>
    %60 = tpu.matmul %59, %49, %cst_30 {dimension_numbers = #tpu.dot_dimension_numbers<[1], [0], [0], [1], [0, 0, 1, 1], [], []>} : vector<128x16xf32>, vector<16x64xf32>, vector<128x64xf32> -> vector<128x64xf32>
    %61 = arith.mulf %60, %1 : vector<128x64xf32>
    %62 = vector.extract_strided_slice %61 {offsets = [0, 0], sizes = [16, 64], strides = [1, 1]} : vector<128x64xf32> to vector<16x64xf32>
    %63 = vector.extract_strided_slice %61 {offsets = [16, 0], sizes = [16, 64], strides = [1, 1]} : vector<128x64xf32> to vector<16x64xf32>
    %64 = arith.addf %62, %63 : vector<16x64xf32>
    %65 = vector.extract_strided_slice %61 {offsets = [32, 0], sizes = [16, 64], strides = [1, 1]} : vector<128x64xf32> to vector<16x64xf32>
    %66 = arith.addf %64, %65 : vector<16x64xf32>
    %67 = vector.extract_strided_slice %61 {offsets = [48, 0], sizes = [16, 64], strides = [1, 1]} : vector<128x64xf32> to vector<16x64xf32>
    %68 = arith.addf %66, %67 : vector<16x64xf32>
    %69 = vector.extract_strided_slice %61 {offsets = [64, 0], sizes = [16, 64], strides = [1, 1]} : vector<128x64xf32> to vector<16x64xf32>
    %70 = arith.addf %68, %69 : vector<16x64xf32>
    %71 = vector.extract_strided_slice %61 {offsets = [80, 0], sizes = [16, 64], strides = [1, 1]} : vector<128x64xf32> to vector<16x64xf32>
    %72 = arith.addf %70, %71 : vector<16x64xf32>
    %73 = vector.extract_strided_slice %61 {offsets = [96, 0], sizes = [16, 64], strides = [1, 1]} : vector<128x64xf32> to vector<16x64xf32>
    %74 = arith.addf %72, %73 : vector<16x64xf32>
    %75 = vector.extract_strided_slice %61 {offsets = [112, 0], sizes = [16, 64], strides = [1, 1]} : vector<128x64xf32> to vector<16x64xf32>
    %76 = arith.addf %74, %75 : vector<16x64xf32>
    %c0_i32_31 = arith.constant 0 : i32
    %c0_i32_32 = arith.constant 0 : i32
    %c0_i32_33 = arith.constant 0 : i32
    %77 = tpu.memref_slice %arg6[%c0_i32_31, %c0_i32_32, %c0_i32_33] : memref<2x64x384xf32, #tpu.memory_space<vmem>> -> memref<1x64x384xf32, #tpu.memory_space<vmem>>
    %78 = tpu.memref_squeeze %77 : memref<1x64x384xf32, #tpu.memory_space<vmem>> -> memref<64x384xf32, #tpu.memory_space<vmem>>
    %c0_34 = arith.constant 0 : index
    %c192_35 = arith.constant 192 : index
    %79 = vector.load %78[%c0_34, %c192_35] : memref<64x384xf32, #tpu.memory_space<vmem>>, vector<64x64xf32>
    %cst_36 = arith.constant dense<0.000000e+00> : vector<16x64xf32>
    %80 = tpu.matmul %76, %79, %cst_36 {dimension_numbers = #tpu.dot_dimension_numbers<[1], [0], [0], [1], [0, 0, 1, 1], [], []>} : vector<16x64xf32>, vector<64x64xf32>, vector<16x64xf32> -> vector<16x64xf32>
    %81 = vector.broadcast %16 : vector<1x64xf32> to vector<16x64xf32>
    %82 = arith.addf %80, %81 : vector<16x64xf32>
    %83 = arith.addf %13, %82 : vector<16x64xf32>
    %cst_37 = arith.constant dense<0.000000e+00> : vector<16xf32>
    %84 = vector.multi_reduction <add>, %83, %cst_37 [1] : vector<16x64xf32> to vector<16xf32>
    %85 = vector.shape_cast %84 : vector<16xf32> to vector<16x1xf32>
    %cst_38 = arith.constant 6.400000e+01 : f32
    %86 = vector.broadcast %cst_38 : f32 to vector<16x1xf32>
    %87 = arith.divf %85, %86 : vector<16x1xf32>
    %88 = vector.broadcast %87 : vector<16x1xf32> to vector<16x64xf32>
    %89 = arith.subf %83, %88 : vector<16x64xf32>
    %90 = arith.mulf %89, %89 : vector<16x64xf32>
    %cst_39 = arith.constant dense<0.000000e+00> : vector<16xf32>
    %91 = vector.multi_reduction <add>, %90, %cst_39 [1] : vector<16x64xf32> to vector<16xf32>
    %92 = vector.shape_cast %91 : vector<16xf32> to vector<16x1xf32>
    %cst_40 = arith.constant 6.400000e+01 : f32
    %93 = vector.broadcast %cst_40 : f32 to vector<16x1xf32>
    %94 = arith.divf %92, %93 : vector<16x1xf32>
    %95 = vector.broadcast %87 : vector<16x1xf32> to vector<16x64xf32>
    %96 = arith.subf %83, %95 : vector<16x64xf32>
    %cst_41 = arith.constant 9.99999974E-6 : f32
    %97 = vector.broadcast %cst_41 : f32 to vector<16x1xf32>
    %98 = arith.addf %94, %97 : vector<16x1xf32>
    %99 = math.rsqrt %98 : vector<16x1xf32>
    %100 = vector.broadcast %99 : vector<16x1xf32> to vector<16x64xf32>
    %101 = arith.mulf %96, %100 : vector<16x64xf32>
    %102 = vector.broadcast %17 : vector<1x64xf32> to vector<16x64xf32>
    %103 = arith.mulf %101, %102 : vector<16x64xf32>
    %104 = vector.broadcast %18 : vector<1x64xf32> to vector<16x64xf32>
    %105 = arith.addf %103, %104 : vector<16x64xf32>
    %c0_i32_42 = arith.constant 0 : i32
    %c0_i32_43 = arith.constant 0 : i32
    %c0_i32_44 = arith.constant 0 : i32
    %106 = tpu.memref_slice %arg6[%c0_i32_42, %c0_i32_43, %c0_i32_44] : memref<2x64x384xf32, #tpu.memory_space<vmem>> -> memref<1x64x384xf32, #tpu.memory_space<vmem>>
    %107 = tpu.memref_squeeze %106 : memref<1x64x384xf32, #tpu.memory_space<vmem>> -> memref<64x384xf32, #tpu.memory_space<vmem>>
    %c0_45 = arith.constant 0 : index
    %c256_46 = arith.constant 256 : index
    %108 = vector.load %107[%c0_45, %c256_46] : memref<64x384xf32, #tpu.memory_space<vmem>>, vector<64x128xf32>
    %cst_47 = arith.constant dense<0.000000e+00> : vector<16x128xf32>
    %109 = tpu.matmul %105, %108, %cst_47 {dimension_numbers = #tpu.dot_dimension_numbers<[1], [0], [0], [1], [0, 0, 1, 1], [], []>} : vector<16x64xf32>, vector<64x128xf32>, vector<16x128xf32> -> vector<16x128xf32>
    %110 = vector.broadcast %19 : vector<1x128xf32> to vector<16x128xf32>
    %111 = arith.addf %109, %110 : vector<16x128xf32>
    %cst_48 = arith.constant 0.000000e+00 : f32
    %112 = vector.broadcast %cst_48 : f32 to vector<16x128xf32>
    %113 = arith.maximumf %111, %112 : vector<16x128xf32>
    %c0_49 = arith.constant 0 : index
    %c0_50 = arith.constant 0 : index
    %c0_51 = arith.constant 0 : index
    %114 = vector.load %arg7[%c0_49, %c0_50, %c0_51] : memref<2x128x64xf32, #tpu.memory_space<vmem>>, vector<1x128x64xf32>
    %115 = vector.shape_cast %114 : vector<1x128x64xf32> to vector<128x64xf32>
    %cst_52 = arith.constant dense<0.000000e+00> : vector<16x64xf32>
    %116 = tpu.matmul %113, %115, %cst_52 {dimension_numbers = #tpu.dot_dimension_numbers<[1], [0], [0], [1], [0, 0, 1, 1], [], []>} : vector<16x128xf32>, vector<128x64xf32>, vector<16x64xf32> -> vector<16x64xf32>
    %117 = vector.broadcast %20 : vector<1x64xf32> to vector<16x64xf32>
    %118 = arith.addf %116, %117 : vector<16x64xf32>
    %119 = arith.addf %83, %118 : vector<16x64xf32>
    %c1 = arith.constant 1 : index
    %c0_53 = arith.constant 0 : index
    %120 = vector.load %arg5[%c1, %c0_53] : memref<2x512xf32, #tpu.memory_space<vmem>>, vector<1x64xf32>
    %c1_54 = arith.constant 1 : index
    %c64_55 = arith.constant 64 : index
    %121 = vector.load %arg5[%c1_54, %c64_55] : memref<2x512xf32, #tpu.memory_space<vmem>>, vector<1x64xf32>
    %c1_56 = arith.constant 1 : index
    %c128_57 = arith.constant 128 : index
    %122 = vector.load %arg5[%c1_56, %c128_57] : memref<2x512xf32, #tpu.memory_space<vmem>>, vector<1x64xf32>
    %c1_58 = arith.constant 1 : index
    %c192_59 = arith.constant 192 : index
    %123 = vector.load %arg5[%c1_58, %c192_59] : memref<2x512xf32, #tpu.memory_space<vmem>>, vector<1x64xf32>
    %c1_60 = arith.constant 1 : index
    %c256_61 = arith.constant 256 : index
    %124 = vector.load %arg5[%c1_60, %c256_61] : memref<2x512xf32, #tpu.memory_space<vmem>>, vector<1x64xf32>
    %c1_62 = arith.constant 1 : index
    %c320_63 = arith.constant 320 : index
    %125 = vector.load %arg5[%c1_62, %c320_63] : memref<2x512xf32, #tpu.memory_space<vmem>>, vector<1x128xf32>
    %c1_64 = arith.constant 1 : index
    %c448_65 = arith.constant 448 : index
    %126 = vector.load %arg5[%c1_64, %c448_65] : memref<2x512xf32, #tpu.memory_space<vmem>>, vector<1x64xf32>
    %cst_66 = arith.constant dense<0.000000e+00> : vector<16xf32>
    %127 = vector.multi_reduction <add>, %119, %cst_66 [1] : vector<16x64xf32> to vector<16xf32>
    %128 = vector.shape_cast %127 : vector<16xf32> to vector<16x1xf32>
    %cst_67 = arith.constant 6.400000e+01 : f32
    %129 = vector.broadcast %cst_67 : f32 to vector<16x1xf32>
    %130 = arith.divf %128, %129 : vector<16x1xf32>
    %131 = vector.broadcast %130 : vector<16x1xf32> to vector<16x64xf32>
    %132 = arith.subf %119, %131 : vector<16x64xf32>
    %133 = arith.mulf %132, %132 : vector<16x64xf32>
    %cst_68 = arith.constant dense<0.000000e+00> : vector<16xf32>
    %134 = vector.multi_reduction <add>, %133, %cst_68 [1] : vector<16x64xf32> to vector<16xf32>
    %135 = vector.shape_cast %134 : vector<16xf32> to vector<16x1xf32>
    %cst_69 = arith.constant 6.400000e+01 : f32
    %136 = vector.broadcast %cst_69 : f32 to vector<16x1xf32>
    %137 = arith.divf %135, %136 : vector<16x1xf32>
    %138 = vector.broadcast %130 : vector<16x1xf32> to vector<16x64xf32>
    %139 = arith.subf %119, %138 : vector<16x64xf32>
    %cst_70 = arith.constant 9.99999974E-6 : f32
    %140 = vector.broadcast %cst_70 : f32 to vector<16x1xf32>
    %141 = arith.addf %137, %140 : vector<16x1xf32>
    %142 = math.rsqrt %141 : vector<16x1xf32>
    %143 = vector.broadcast %142 : vector<16x1xf32> to vector<16x64xf32>
    %144 = arith.mulf %139, %143 : vector<16x64xf32>
    %145 = vector.broadcast %120 : vector<1x64xf32> to vector<16x64xf32>
    %146 = arith.mulf %144, %145 : vector<16x64xf32>
    %147 = vector.broadcast %121 : vector<1x64xf32> to vector<16x64xf32>
    %148 = arith.addf %146, %147 : vector<16x64xf32>
    %c1_i32 = arith.constant 1 : i32
    %c0_i32_71 = arith.constant 0 : i32
    %c0_i32_72 = arith.constant 0 : i32
    %149 = tpu.memref_slice %arg6[%c1_i32, %c0_i32_71, %c0_i32_72] : memref<2x64x384xf32, #tpu.memory_space<vmem>> -> memref<1x64x384xf32, #tpu.memory_space<vmem>>
    %150 = tpu.memref_squeeze %149 : memref<1x64x384xf32, #tpu.memory_space<vmem>> -> memref<64x384xf32, #tpu.memory_space<vmem>>
    %c0_73 = arith.constant 0 : index
    %c0_74 = arith.constant 0 : index
    %151 = vector.load %150[%c0_73, %c0_74] : memref<64x384xf32, #tpu.memory_space<vmem>>, vector<64x192xf32>
    %cst_75 = arith.constant dense<0.000000e+00> : vector<16x192xf32>
    %152 = tpu.matmul %148, %151, %cst_75 {dimension_numbers = #tpu.dot_dimension_numbers<[1], [0], [0], [1], [0, 0, 1, 1], [], []>} : vector<16x64xf32>, vector<64x192xf32>, vector<16x192xf32> -> vector<16x192xf32>
    %153 = vector.extract_strided_slice %152 {offsets = [0, 0], sizes = [16, 64], strides = [1, 1]} : vector<16x192xf32> to vector<16x64xf32>
    %154 = vector.extract_strided_slice %152 {offsets = [0, 64], sizes = [16, 64], strides = [1, 1]} : vector<16x192xf32> to vector<16x64xf32>
    %155 = vector.extract_strided_slice %152 {offsets = [0, 128], sizes = [16, 64], strides = [1, 1]} : vector<16x192xf32> to vector<16x64xf32>
    %156 = tpu.concatenate %153, %153, %153, %153, %153, %153, %153, %153 in 0 : vector<16x64xf32>, vector<16x64xf32>, vector<16x64xf32>, vector<16x64xf32>, vector<16x64xf32>, vector<16x64xf32>, vector<16x64xf32>, vector<16x64xf32> -> vector<128x64xf32>
    %157 = arith.mulf %156, %1 : vector<128x64xf32>
    %cst_76 = arith.constant dense<0.000000e+00> : vector<128x16xf32>
    %158 = tpu.matmul %157, %154, %cst_76 {dimension_numbers = #tpu.dot_dimension_numbers<[1], [1], [0], [0], [0, 0, 1, 0], [], []>} : vector<128x64xf32>, vector<16x64xf32>, vector<128x16xf32> -> vector<128x16xf32>
    %159 = math.exp %158 : vector<128x16xf32>
    %160 = arith.mulf %159, %2 : vector<128x16xf32>
    %cst_77 = arith.constant dense<0.000000e+00> : vector<128xf32>
    %161 = vector.multi_reduction <add>, %160, %cst_77 [1] : vector<128x16xf32> to vector<128xf32>
    %162 = vector.shape_cast %161 : vector<128xf32> to vector<128x1xf32>
    %163 = tpu.reciprocal %162 {approx = true} : vector<128x1xf32> -> vector<128x1xf32>
    %164 = vector.broadcast %163 : vector<128x1xf32> to vector<128x16xf32>
    %165 = arith.mulf %160, %164 : vector<128x16xf32>
    %cst_78 = arith.constant dense<0.000000e+00> : vector<128x64xf32>
    %166 = tpu.matmul %165, %155, %cst_78 {dimension_numbers = #tpu.dot_dimension_numbers<[1], [0], [0], [1], [0, 0, 1, 1], [], []>} : vector<128x16xf32>, vector<16x64xf32>, vector<128x64xf32> -> vector<128x64xf32>
    %167 = arith.mulf %166, %1 : vector<128x64xf32>
    %168 = vector.extract_strided_slice %167 {offsets = [0, 0], sizes = [16, 64], strides = [1, 1]} : vector<128x64xf32> to vector<16x64xf32>
    %169 = vector.extract_strided_slice %167 {offsets = [16, 0], sizes = [16, 64], strides = [1, 1]} : vector<128x64xf32> to vector<16x64xf32>
    %170 = arith.addf %168, %169 : vector<16x64xf32>
    %171 = vector.extract_strided_slice %167 {offsets = [32, 0], sizes = [16, 64], strides = [1, 1]} : vector<128x64xf32> to vector<16x64xf32>
    %172 = arith.addf %170, %171 : vector<16x64xf32>
    %173 = vector.extract_strided_slice %167 {offsets = [48, 0], sizes = [16, 64], strides = [1, 1]} : vector<128x64xf32> to vector<16x64xf32>
    %174 = arith.addf %172, %173 : vector<16x64xf32>
    %175 = vector.extract_strided_slice %167 {offsets = [64, 0], sizes = [16, 64], strides = [1, 1]} : vector<128x64xf32> to vector<16x64xf32>
    %176 = arith.addf %174, %175 : vector<16x64xf32>
    %177 = vector.extract_strided_slice %167 {offsets = [80, 0], sizes = [16, 64], strides = [1, 1]} : vector<128x64xf32> to vector<16x64xf32>
    %178 = arith.addf %176, %177 : vector<16x64xf32>
    %179 = vector.extract_strided_slice %167 {offsets = [96, 0], sizes = [16, 64], strides = [1, 1]} : vector<128x64xf32> to vector<16x64xf32>
    %180 = arith.addf %178, %179 : vector<16x64xf32>
    %181 = vector.extract_strided_slice %167 {offsets = [112, 0], sizes = [16, 64], strides = [1, 1]} : vector<128x64xf32> to vector<16x64xf32>
    %182 = arith.addf %180, %181 : vector<16x64xf32>
    %c1_i32_79 = arith.constant 1 : i32
    %c0_i32_80 = arith.constant 0 : i32
    %c0_i32_81 = arith.constant 0 : i32
    %183 = tpu.memref_slice %arg6[%c1_i32_79, %c0_i32_80, %c0_i32_81] : memref<2x64x384xf32, #tpu.memory_space<vmem>> -> memref<1x64x384xf32, #tpu.memory_space<vmem>>
    %184 = tpu.memref_squeeze %183 : memref<1x64x384xf32, #tpu.memory_space<vmem>> -> memref<64x384xf32, #tpu.memory_space<vmem>>
    %c0_82 = arith.constant 0 : index
    %c192_83 = arith.constant 192 : index
    %185 = vector.load %184[%c0_82, %c192_83] : memref<64x384xf32, #tpu.memory_space<vmem>>, vector<64x64xf32>
    %cst_84 = arith.constant dense<0.000000e+00> : vector<16x64xf32>
    %186 = tpu.matmul %182, %185, %cst_84 {dimension_numbers = #tpu.dot_dimension_numbers<[1], [0], [0], [1], [0, 0, 1, 1], [], []>} : vector<16x64xf32>, vector<64x64xf32>, vector<16x64xf32> -> vector<16x64xf32>
    %187 = vector.broadcast %122 : vector<1x64xf32> to vector<16x64xf32>
    %188 = arith.addf %186, %187 : vector<16x64xf32>
    %189 = arith.addf %119, %188 : vector<16x64xf32>
    %cst_85 = arith.constant dense<0.000000e+00> : vector<16xf32>
    %190 = vector.multi_reduction <add>, %189, %cst_85 [1] : vector<16x64xf32> to vector<16xf32>
    %191 = vector.shape_cast %190 : vector<16xf32> to vector<16x1xf32>
    %cst_86 = arith.constant 6.400000e+01 : f32
    %192 = vector.broadcast %cst_86 : f32 to vector<16x1xf32>
    %193 = arith.divf %191, %192 : vector<16x1xf32>
    %194 = vector.broadcast %193 : vector<16x1xf32> to vector<16x64xf32>
    %195 = arith.subf %189, %194 : vector<16x64xf32>
    %196 = arith.mulf %195, %195 : vector<16x64xf32>
    %cst_87 = arith.constant dense<0.000000e+00> : vector<16xf32>
    %197 = vector.multi_reduction <add>, %196, %cst_87 [1] : vector<16x64xf32> to vector<16xf32>
    %198 = vector.shape_cast %197 : vector<16xf32> to vector<16x1xf32>
    %cst_88 = arith.constant 6.400000e+01 : f32
    %199 = vector.broadcast %cst_88 : f32 to vector<16x1xf32>
    %200 = arith.divf %198, %199 : vector<16x1xf32>
    %201 = vector.broadcast %193 : vector<16x1xf32> to vector<16x64xf32>
    %202 = arith.subf %189, %201 : vector<16x64xf32>
    %cst_89 = arith.constant 9.99999974E-6 : f32
    %203 = vector.broadcast %cst_89 : f32 to vector<16x1xf32>
    %204 = arith.addf %200, %203 : vector<16x1xf32>
    %205 = math.rsqrt %204 : vector<16x1xf32>
    %206 = vector.broadcast %205 : vector<16x1xf32> to vector<16x64xf32>
    %207 = arith.mulf %202, %206 : vector<16x64xf32>
    %208 = vector.broadcast %123 : vector<1x64xf32> to vector<16x64xf32>
    %209 = arith.mulf %207, %208 : vector<16x64xf32>
    %210 = vector.broadcast %124 : vector<1x64xf32> to vector<16x64xf32>
    %211 = arith.addf %209, %210 : vector<16x64xf32>
    %c1_i32_90 = arith.constant 1 : i32
    %c0_i32_91 = arith.constant 0 : i32
    %c0_i32_92 = arith.constant 0 : i32
    %212 = tpu.memref_slice %arg6[%c1_i32_90, %c0_i32_91, %c0_i32_92] : memref<2x64x384xf32, #tpu.memory_space<vmem>> -> memref<1x64x384xf32, #tpu.memory_space<vmem>>
    %213 = tpu.memref_squeeze %212 : memref<1x64x384xf32, #tpu.memory_space<vmem>> -> memref<64x384xf32, #tpu.memory_space<vmem>>
    %c0_93 = arith.constant 0 : index
    %c256_94 = arith.constant 256 : index
    %214 = vector.load %213[%c0_93, %c256_94] : memref<64x384xf32, #tpu.memory_space<vmem>>, vector<64x128xf32>
    %cst_95 = arith.constant dense<0.000000e+00> : vector<16x128xf32>
    %215 = tpu.matmul %211, %214, %cst_95 {dimension_numbers = #tpu.dot_dimension_numbers<[1], [0], [0], [1], [0, 0, 1, 1], [], []>} : vector<16x64xf32>, vector<64x128xf32>, vector<16x128xf32> -> vector<16x128xf32>
    %216 = vector.broadcast %125 : vector<1x128xf32> to vector<16x128xf32>
    %217 = arith.addf %215, %216 : vector<16x128xf32>
    %cst_96 = arith.constant 0.000000e+00 : f32
    %218 = vector.broadcast %cst_96 : f32 to vector<16x128xf32>
    %219 = arith.maximumf %217, %218 : vector<16x128xf32>
    %c1_97 = arith.constant 1 : index
    %c0_98 = arith.constant 0 : index
    %c0_99 = arith.constant 0 : index
    %220 = vector.load %arg7[%c1_97, %c0_98, %c0_99] : memref<2x128x64xf32, #tpu.memory_space<vmem>>, vector<1x128x64xf32>
    %221 = vector.shape_cast %220 : vector<1x128x64xf32> to vector<128x64xf32>
    %cst_100 = arith.constant dense<0.000000e+00> : vector<16x64xf32>
    %222 = tpu.matmul %219, %221, %cst_100 {dimension_numbers = #tpu.dot_dimension_numbers<[1], [0], [0], [1], [0, 0, 1, 1], [], []>} : vector<16x128xf32>, vector<128x64xf32>, vector<16x64xf32> -> vector<16x64xf32>
    %223 = vector.broadcast %126 : vector<1x64xf32> to vector<16x64xf32>
    %224 = arith.addf %222, %223 : vector<16x64xf32>
    %225 = arith.addf %189, %224 : vector<16x64xf32>
    %c0_101 = arith.constant 0 : index
    %c0_102 = arith.constant 0 : index
    %226 = vector.load %arg8[%c0_101, %c0_102] : memref<16x64xf32, #tpu.memory_space<vmem>>, vector<16x64xf32>
    tpu.vector_store %arg8[%c0_101, %c0_102], %225 {strides = array<i32>} : memref<16x64xf32, #tpu.memory_space<vmem>>, vector<16x64xf32>,
    return
  }
  func.func @transform_0(%arg0: i32) -> (i32, i32) {
    %c0_i32 = arith.constant 0 : i32
    %c0_i32_0 = arith.constant 0 : i32
    %c0_i32_1 = arith.constant 0 : i32
    return %c0_i32, %c0_i32_0 : i32, i32
  }
  func.func @transform_1(%arg0: i32) -> (i32, i32) {
    %c0_i32 = arith.constant 0 : i32
    %c0_i32_0 = arith.constant 0 : i32
    %c0_i32_1 = arith.constant 0 : i32
    return %c0_i32, %c0_i32_0 : i32, i32
  }
  func.func @transform_2(%arg0: i32) -> (i32, i32) {
    %c0_i32 = arith.constant 0 : i32
    %c0_i32_0 = arith.constant 0 : i32
    %c0_i32_1 = arith.constant 0 : i32
    return %c0_i32, %c0_i32_0 : i32, i32
  }
  func.func @transform_3(%arg0: i32) -> (i32, i32) {
    %c0_i32 = arith.constant 0 : i32
    %c0_i32_0 = arith.constant 0 : i32
    %c0_i32_1 = arith.constant 0 : i32
    return %c0_i32, %c0_i32_0 : i32, i32
  }
  func.func @transform_4(%arg0: i32) -> (i32, i32) {
    %c0_i32 = arith.constant 0 : i32
    %c0_i32_0 = arith.constant 0 : i32
    %c0_i32_1 = arith.constant 0 : i32
    return %c0_i32, %c0_i32_0 : i32, i32
  }
  func.func @transform_5(%arg0: i32) -> (i32, i32, i32) {
    %c0_i32 = arith.constant 0 : i32
    %c0_i32_0 = arith.constant 0 : i32
    %c0_i32_1 = arith.constant 0 : i32
    %c0_i32_2 = arith.constant 0 : i32
    return %c0_i32, %c0_i32_0, %c0_i32_1 : i32, i32, i32
  }
  func.func @transform_6(%arg0: i32) -> (i32, i32, i32) {
    %c0_i32 = arith.constant 0 : i32
    %c0_i32_0 = arith.constant 0 : i32
    %c0_i32_1 = arith.constant 0 : i32
    %c0_i32_2 = arith.constant 0 : i32
    return %c0_i32, %c0_i32_0, %c0_i32_1 : i32, i32, i32
  }
  func.func @transform_7(%arg0: i32) -> (i32, i32) {
    %c0_i32 = arith.constant 0 : i32
    %c0_i32_0 = arith.constant 0 : i32
    %c0_i32_1 = arith.constant 0 : i32
    return %c0_i32, %c0_i32_0 : i32, i32
  }
}

</mosaic_0001>

<llo_original>
// kernel: tpu_custom_call.1
$region0: #{tpu_custom_call.1}
  #allocation0 [shape = 'u32[]', space=smem, size = 0x4, offset = 0x4, fixed_abs, tag = 'smem constant byte address 0x4 - core index']
  #allocation1 [shape = 'u32[144,128]{1,0:T(1,128)}', space=vmem, size = 0x12000, scoped, tag = 'internal scratch']
  %s0 = inlined_call_operand.vmem [shape: f32[2,32], index: 0, kind: input, shape index: {}]
  %s1 = inlined_call_operand.vmem [shape: f32[33,256], index: 1, kind: input, shape index: {}]
  %s2 = inlined_call_operand.vmem [shape: f32[8,64], index: 2, kind: input, shape index: {}]
  %s3 = inlined_call_operand.vmem [shape: f32[128,80], index: 3, kind: input, shape index: {}]
  %s4 = inlined_call_operand.vmem [shape: f32[2,512], index: 4, kind: input, shape index: {}]
  %s5 = inlined_call_operand.vmem [shape: f32[2,64,384], index: 5, kind: input, shape index: {}]
  %s6 = inlined_call_operand.vmem [shape: f32[2,128,64], index: 6, kind: input, shape index: {}]
  %s7 = inlined_call_operand.hbm [shape: f32[16,64], index: 7, kind: output, shape index: {}]
  %s8 = sld [smem:[#allocation0]]
  $region38: #{tpu_custom_call.1} parent=0
    _
  %s10 = ssub.s32 1, %s8
  %s11 = scalar_select 0, %s10, %s8
  $region1: #{tpu_custom_call.1} parent=0
    #allocation2 [shape = 'u8[8192]{0}', space=vmem, size = 0x2000, scoped, tag = 'output window, operand 0, single buffered']
    #allocation3 [shape = 's32[1]{0}', space=sflag, size = 0x4, scoped, tag = 'scoped memory for tpu_custom_call.1']
    %12 = vsyncpa [#allocation3], 0
    // Predicated region
    $region2: #{tpu_custom_call.1} parent=1 // pred_check
      _
    $region3: #{tpu_custom_call.1} parent=1 // pred_check_branch
      %14 = sbr.rel (0) target = $region5
    $region4: #{tpu_custom_call.1} parent=1 // pred_region
      _
    $region5: #{tpu_custom_call.1} parent=1 // pred_fallthru
      _
    // Predicated region
    $region6: #{tpu_custom_call.1} parent=1 // pred_check
      _
    $region7: #{tpu_custom_call.1} parent=1 // pred_check_branch
      %16 = sbr.rel (0) target = $region9
    $region8: #{tpu_custom_call.1} parent=1 // pred_region
      _
    $region9: #{tpu_custom_call.1} parent=1 // pred_fallthru
      _
    // Predicated region
    $region10: #{tpu_custom_call.1} parent=1 // pred_check
      _
    $region11: #{tpu_custom_call.1} parent=1 // pred_check_branch
      %18 = sbr.rel (0) target = $region13
    $region12: #{tpu_custom_call.1} parent=1 // pred_region
      _
    $region13: #{tpu_custom_call.1} parent=1 // pred_fallthru
      _
    // Predicated region
    $region14: #{tpu_custom_call.1} parent=1 // pred_check
      _
    $region15: #{tpu_custom_call.1} parent=1 // pred_check_branch
      %20 = sbr.rel (0) target = $region17
    $region16: #{tpu_custom_call.1} parent=1 // pred_region
      _
    $region17: #{tpu_custom_call.1} parent=1 // pred_fallthru
      _
    // Predicated region
    $region18: #{tpu_custom_call.1} parent=1 // pred_check
      _
    $region19: #{tpu_custom_call.1} parent=1 // pred_check_branch
      %22 = sbr.rel (0) target = $region21
    $region20: #{tpu_custom_call.1} parent=1 // pred_region
      _
    $region21: #{tpu_custom_call.1} parent=1 // pred_fallthru
      _
    // Predicated region
    $region22: #{tpu_custom_call.1} parent=1 // pred_check
      _
    $region23: #{tpu_custom_call.1} parent=1 // pred_check_branch
      %24 = sbr.rel (0) target = $region25
    $region24: #{tpu_custom_call.1} parent=1 // pred_region
      _
    $region25: #{tpu_custom_call.1} parent=1 // pred_fallthru
      _
    // Predicated region
    $region26: #{tpu_custom_call.1} parent=1 // pred_check
      _
    $region27: #{tpu_custom_call.1} parent=1 // pred_check_branch
      %26 = sbr.rel (0) target = $region29
    $region28: #{tpu_custom_call.1} parent=1 // pred_region
      _
    $region29: #{tpu_custom_call.1} parent=1 // pred_fallthru
      _
    %v27 = vld [vmem:[%s0] sm:$0x3]
    %v28 = vld [vmem:[%s3] sm:$0xff]
    %v29 = vld [vmem:[%s3 + $0x8] sm:$0xff]
    %v30 = vld [vmem:[%s3 + $0x10] sm:$0xff]
    %v31 = vld [vmem:[%s3 + $0x18] sm:$0xff]
    %v32 = vld [vmem:[%s3 + $0x20] sm:$0xff]
    %v33 = vld [vmem:[%s3 + $0x28] sm:$0xff]
    %v34 = vld [vmem:[%s3 + $0x30] sm:$0xff]
    %v35 = vld [vmem:[%s3 + $0x38] sm:$0xff]
    %v36 = vld [vmem:[%s3 + $0x40] sm:$0xff]
    %v37 = vld [vmem:[%s3 + $0x48] sm:$0xff]
    %v38 = vld [vmem:[%s3 + $0x50] sm:$0xff]
    %v39 = vld [vmem:[%s3 + $0x58] sm:$0xff]
    %v40 = vld [vmem:[%s3 + $0x60] sm:$0xff]
    %v41 = vld [vmem:[%s3 + $0x68] sm:$0xff]
    %v42 = vld [vmem:[%s3 + $0x70] sm:$0xff]
    %v43 = vld [vmem:[%s3 + $0x78] sm:$0xff]
    %v44 = vld [vmem:[%s1] sm:$0xff]
    %v45 = vld [vmem:[%s1 + $0x8] sm:$0xff]
    %v46 = vld [vmem:[%s1 + $0x10] sm:$0xff]
    %v47 = vld [vmem:[%s1 + $0x18] sm:$0xff]
    %v48 = vld [vmem:[%s1 + $0x20] sm:$0xff]
    %v49 = vld [vmem:[%s1 + $0x28] sm:$0xff]
    %v50 = vld [vmem:[%s1 + $0x30] sm:$0xff]
    %v51 = vld [vmem:[%s1 + $0x38] sm:$0xff]
    %s52 = scalar_lea.vmem %s1, 64
    %v53 = vld [vmem:[%s52] ss:$8 sm:$0x3]
    %v55 = vlaneseq
    %v56 = vshrl.u32 %v55, 7
    %v57 = vsub.s32 0, %v56
    %v58 = vrot.slane %v53, %v57
    %v59 = vlaneseq
    %v60 = vshrl.u32 %v59, 7
    %v61 = vsub.s32 1, %v60
    %v62 = vrot.slane %v53, %v61
    %vm65 = vcmask 261120
    %v67 = vsel %vm65, %v27, 0
    %69 = vmatprep.subr.mxu0 %v45
    %70 = vmatpush1.msra.mxu0 %v44
    %71 = vmatprep.subr.mxu0 %v47
    %72 = vmatpush1.msra.mxu0 %v46
    %73 = vmatprep.subr.mxu0 %v49
    %74 = vmatpush1.msra.mxu0 %v48
    %75 = vmatprep.subr.mxu0 %v51
    %76 = vmatpush1.msra.mxu0 %v50
    %77 = vmatprep.subr.mxu0 0.0
    %78 = vmatpush1.msra.mxu0 0.0
    %79 = vmatprep.subr.mxu0 0.0
    %80 = vmatpush1.msra.mxu0 0.0
    %81 = vmatprep.subr.mxu0 0.0
    %82 = vmatpush1.msra.mxu0 0.0
    %83 = vmatprep.subr.mxu0 0.0
    %84 = vmatpush1.msra.mxu0 0.0
    %85 = vmatprep.subr.mxu0 0.0
    %86 = vmatpush1.msra.mxu0 0.0
    %87 = vmatprep.subr.mxu0 0.0
    %88 = vmatpush1.msra.mxu0 0.0
    %89 = vmatprep.subr.mxu0 0.0
    %90 = vmatpush1.msra.mxu0 0.0
    %91 = vmatprep.subr.mxu0 0.0
    %92 = vmatpush1.msra.mxu0 0.0
    %93 = vmatprep.subr.mxu0 0.0
    %94 = vmatpush1.msra.mxu0 0.0
    %95 = vmatprep.subr.mxu0 0.0
    %96 = vmatpush1.msra.mxu0 0.0
    %97 = vmatprep.subr.mxu0 0.0
    %98 = vmatpush1.msra.mxu0 0.0
    %99 = vmatprep.subr.mxu0 0.0
    %100 = vmatpush1.msra.mxu0 0.0
    %101 = vmatprep.subr.mxu0 0.0
    %102 = vmatpush1.msra.mxu0 0.0
    %103 = vmatprep.subr.mxu0 0.0
    %104 = vmatpush1.msra.mxu0 0.0
    %105 = vmatprep.subr.mxu0 0.0
    %106 = vmatpush1.msra.mxu0 0.0
    %107 = vmatprep.subr.mxu0 0.0
    %108 = vmatpush1.msra.mxu0 0.0
    %109 = vmatprep.subr.mxu0 0.0
    %110 = vmatpush1.msra.mxu0 0.0
    %111 = vmatprep.subr.mxu0 0.0
    %112 = vmatpush1.msra.mxu0 0.0
    %113 = vmatprep.subr.mxu0 0.0
    %114 = vmatpush1.msra.mxu0 0.0
    %115 = vmatprep.subr.mxu0 0.0
    %116 = vmatpush1.msra.mxu0 0.0
    %117 = vmatprep.subr.mxu0 0.0
    %118 = vmatpush1.msra.mxu0 0.0
    %119 = vmatprep.subr.mxu0 0.0
    %120 = vmatpush1.msra.mxu0 0.0
    %121 = vmatprep.subr.mxu0 0.0
    %122 = vmatpush1.msra.mxu0 0.0
    %123 = vmatprep.subr.mxu0 0.0
    %124 = vmatpush1.msra.mxu0 0.0
    %125 = vmatprep.subr.mxu0 0.0
    %126 = vmatpush1.msra.mxu0 0.0
    %127 = vmatprep.subr.mxu0 0.0
    %128 = vmatpush1.msra.mxu0 0.0
    %129 = vmatprep.subr.mxu0 0.0
    %130 = vmatpush1.msra.mxu0 0.0
    %131 = vmatprep.subr.mxu0 0.0
    %132 = vmatpush1.msra.mxu0 0.0
    %133 = vmatprep.mubr.f32.mxu0 0.0
    %134 = vmatmul.mubr.f32.gmra.mrb[0].mxu0 %v67
    %v135 = vpop.f32.mrb[0].mxu0
    %v136 = vadd.f32 %v58, %v135
    %v137 = vpop.f32.mrb[0].mxu0
    %v138 = vadd.f32 %v62, %v137
    %139 = vdwg.mxu0
    %v140 = vld [vmem:[%s2] sm:$0xff]
    %v142 = vrot.slane %v136, 6
    %143 = vrot.lane.b32.xlu0 %v142, 64
    %v144 = vpop.permute.xlu0 %143
    %v147 = vrot.slane %v138, 4
    %v149 = vrot.slane %v138, 2
    %150 = vrot.lane.b32.xlu0 %v149, 64
    %v151 = vpop.permute.xlu0 %150
    %vm153 = vcmask 1041408
    %v154 = vsel %vm153, %v136, %v144
    %vm155 = vcmask 1043456
    %v156 = vsel %vm155, %v154, %v147
    %vm157 = vcmask 1045504
    %v158 = vsel %vm157, %v156, %v151
    %v159 = vld [vmem:[%s4] sm:$0x1]
    %v160 = vld [vmem:[%s4 + $0x2] sm:$0x1]
    %v161 = vld [vmem:[%s4 + $0x4] sm:$0x1]
    %v162 = vld [vmem:[%s4 + $0x4] sm:$0x5]
    %v163 = vld [vmem:[%s4 + $0x6] sm:$0x1]
    %vm164 = vcmask 523264
    %v165 = vsel %vm164, %v158, 0.0
    %166 = vadd.xlane.f32.xlu0 %v165
    %v167 = vpop.xlane.xlu0 %166
    %v168 = vsel %vm164, %v140, 0.0
    %169 = vadd.xlane.f32.xlu0 %v168
    %v170 = vpop.xlane.xlu0 %169
    %v171 = vrcp.pop 64.0
    %v172 = vmul.f32 %v167, %v171
    %v173 = vmul.f32 %v170, %v171
    %v174 = vsub.f32 %v158, %v172
    %v175 = vsub.f32 %v140, %v173
    %v176 = vmul.f32 %v174, %v174
    %v177 = vmul.f32 %v175, %v175
    %v178 = vsel %vm164, %v176, 0.0
    %179 = vadd.xlane.f32.xlu0 %v178
    %v180 = vpop.xlane.xlu0 %179
    %v181 = vsel %vm164, %v177, 0.0
    %182 = vadd.xlane.f32.xlu0 %v181
    %v183 = vpop.xlane.xlu0 %182
    %v184 = vmul.f32 %v180, %v171
    %v185 = vmul.f32 %v183, %v171
    %v186 = vadd.f32 %v184, 1e-05
    %v187 = vadd.f32 %v185, 1e-05
    %v188 = vrsqrt.pop %v186
    %v189 = vrsqrt.pop %v187
    %v190 = vmul.f32 %v174, %v188
    %v191 = vmul.f32 %v175, %v189
    %v192 = vlaneseq
    %v193 = vshrl.u32 %v192, 7
    %v194 = vsub.s32 0, %v193
    %v195 = vrot.slane %v159, %v194
    %v196 = vmul.f32 %v190, %v195
    %v197 = vmul.f32 %v191, %v195
    %199 = vrot.lane.b32.xlu0 %v195, 64
    %v200 = vpop.permute.xlu0 %199
    %v202 = vadd.f32 %v196, %v200
    %v203 = vadd.f32 %v197, %v200
    %v204 = vld [vmem:[%s5] sm:$0xff]
    %v205 = vld [vmem:[%s5 + $0x8] sm:$0xff]
    %v206 = vld [vmem:[%s5 + $0x18] sm:$0xff]
    %v207 = vld [vmem:[%s5 + $0x20] sm:$0xff]
    %v208 = vld [vmem:[%s5 + $0x30] sm:$0xff]
    %v209 = vld [vmem:[%s5 + $0x38] sm:$0xff]
    %v210 = vld [vmem:[%s5 + $0x48] sm:$0xff]
    %v211 = vld [vmem:[%s5 + $0x50] sm:$0xff]
    %v212 = vld [vmem:[%s5 + $0x60] sm:$0xff]
    %v213 = vld [vmem:[%s5 + $0x68] sm:$0xff]
    %v214 = vld [vmem:[%s5 + $0x78] sm:$0xff]
    %v215 = vld [vmem:[%s5 + $0x80] sm:$0xff]
    %v216 = vld [vmem:[%s5 + $0x90] sm:$0xff]
    %v217 = vld [vmem:[%s5 + $0x98] sm:$0xff]
    %v218 = vld [vmem:[%s5 + $0xa8] sm:$0xff]
    %v219 = vld [vmem:[%s5 + $0xb0] sm:$0xff]
    %v221 = vsel %vm164, %v202, 0
    %v224 = vsel %vm164, %v203, 0
    %226 = vmatprep.subr.mxu0 %v205
    %227 = vmatpush1.msra.mxu0 %v204
    %228 = vmatprep.subr.mxu0 %v207
    %229 = vmatpush1.msra.mxu0 %v206
    %230 = vmatprep.subr.mxu0 %v209
    %231 = vmatpush1.msra.mxu0 %v208
    %232 = vmatprep.subr.mxu0 %v211
    %233 = vmatpush1.msra.mxu0 %v210
    %234 = vmatprep.subr.mxu0 %v213
    %235 = vmatpush1.msra.mxu0 %v212
    %236 = vmatprep.subr.mxu0 %v215
    %237 = vmatpush1.msra.mxu0 %v214
    %238 = vmatprep.subr.mxu0 %v217
    %239 = vmatpush1.msra.mxu0 %v216
    %240 = vmatprep.subr.mxu0 %v219
    %241 = vmatpush1.msra.mxu0 %v218
    %242 = vmatprep.subr.mxu0 0.0
    %243 = vmatpush1.msra.mxu0 0.0
    %244 = vmatprep.subr.mxu0 0.0
    %245 = vmatpush1.msra.mxu0 0.0
    %246 = vmatprep.subr.mxu0 0.0
    %247 = vmatpush1.msra.mxu0 0.0
    %248 = vmatprep.subr.mxu0 0.0
    %249 = vmatpush1.msra.mxu0 0.0
    %250 = vmatprep.subr.mxu0 0.0
    %251 = vmatpush1.msra.mxu0 0.0
    %252 = vmatprep.subr.mxu0 0.0
    %253 = vmatpush1.msra.mxu0 0.0
    %254 = vmatprep.subr.mxu0 0.0
    %255 = vmatpush1.msra.mxu0 0.0
    %256 = vmatprep.subr.mxu0 0.0
    %257 = vmatpush1.msra.mxu0 0.0
    %258 = vmatprep.subr.mxu0 0.0
    %259 = vmatpush1.msra.mxu0 0.0
    %260 = vmatprep.subr.mxu0 0.0
    %261 = vmatpush1.msra.mxu0 0.0
    %262 = vmatprep.subr.mxu0 0.0
    %263 = vmatpush1.msra.mxu0 0.0
    %264 = vmatprep.subr.mxu0 0.0
    %265 = vmatpush1.msra.mxu0 0.0
    %266 = vmatprep.subr.mxu0 0.0
    %267 = vmatpush1.msra.mxu0 0.0
    %268 = vmatprep.subr.mxu0 0.0
    %269 = vmatpush1.msra.mxu0 0.0
    %270 = vmatprep.subr.mxu0 0.0
    %271 = vmatpush1.msra.mxu0 0.0
    %272 = vmatprep.subr.mxu0 0.0
    %273 = vmatpush1.msra.mxu0 0.0
    %274 = vmatprep.subr.mxu0 0.0
    %275 = vmatpush1.msra.mxu0 0.0
    %276 = vmatprep.subr.mxu0 0.0
    %277 = vmatpush1.msra.mxu0 0.0
    %278 = vmatprep.subr.mxu0 0.0
    %279 = vmatpush1.msra.mxu0 0.0
    %280 = vmatprep.subr.mxu0 0.0
    %281 = vmatpush1.msra.mxu0 0.0
    %282 = vmatprep.subr.mxu0 0.0
    %283 = vmatpush1.msra.mxu0 0.0
    %284 = vmatprep.subr.mxu0 0.0
    %285 = vmatpush1.msra.mxu0 0.0
    %286 = vmatprep.subr.mxu0 0.0
    %287 = vmatpush1.msra.mxu0 0.0
    %288 = vmatprep.subr.mxu0 0.0
    %289 = vmatpush1.msra.mxu0 0.0
    %290 = vmatprep.mubr.f32.mxu0 0.0
    %291 = vmatmul.mubr.f32.gmra.mrb[0].mxu0 %v221
    %v292 = vpop.f32.mrb[0].mxu0
    %v293 = vadd.f32 0.0, %v292
    %v294 = vpop.f32.mrb[0].mxu0
    %v295 = vadd.f32 0.0, %v294
    %296 = vmatprep.mubr.f32.mxu0 0.0
    %297 = vmatmul.mubr.f32.gmra.mrb[0].mxu0 %v224
    %v298 = vpop.f32.mrb[0].mxu0
    %v299 = vadd.f32 0.0, %v298
    %v300 = vpop.f32.mrb[0].mxu0
    %v301 = vadd.f32 0.0, %v300
    %302 = vdwg.mxu0
    %v303 = vmul.f32 %v293, %v28
    %v304 = vmul.f32 %v299, %v29
    %v305 = vmul.f32 %v293, %v30
    %v306 = vmul.f32 %v299, %v31
    %v307 = vmul.f32 %v293, %v32
    %v308 = vmul.f32 %v299, %v33
    %v309 = vmul.f32 %v293, %v34
    %v310 = vmul.f32 %v299, %v35
    %v311 = vmul.f32 %v293, %v36
    %v312 = vmul.f32 %v299, %v37
    %v313 = vmul.f32 %v293, %v38
    %v314 = vmul.f32 %v299, %v39
    %v315 = vmul.f32 %v293, %v40
    %v316 = vmul.f32 %v299, %v41
    %v317 = vmul.f32 %v293, %v42
    %v318 = vmul.f32 %v299, %v43
    %321 = vrot.lane.b32.xlu0 %v293, 64
    %v322 = vpop.permute.xlu0 %321
    %323 = vrot.lane.b32.xlu0 %v299, 64
    %v324 = vpop.permute.xlu0 %323
    %v326 = vsel %vm164, %v303, 0
    %v329 = vsel %vm164, %v304, 0
    %v332 = vsel %vm164, %v305, 0
    %v335 = vsel %vm164, %v306, 0
    %v338 = vsel %vm164, %v307, 0
    %v341 = vsel %vm164, %v308, 0
    %v344 = vsel %vm164, %v309, 0
    %v347 = vsel %vm164, %v310, 0
    %v350 = vsel %vm164, %v311, 0
    %v353 = vsel %vm164, %v312, 0
    %v356 = vsel %vm164, %v313, 0
    %v359 = vsel %vm164, %v314, 0
    %v362 = vsel %vm164, %v315, 0
    %v365 = vsel %vm164, %v316, 0
    %v368 = vsel %vm164, %v317, 0
    %v371 = vsel %vm164, %v318, 0
    %v373 = vsel %vm164, %v322, 0
    %v375 = vsel %vm164, %v324, 0
    %377 = vmatprep.subr.mxu0 0.0
    %378 = vmatpush1.xpose.msra.mxu0 %v373
    %379 = vmatprep.subr.mxu0 0.0
    %380 = vmatpush1.xpose.msra.mxu0 %v375
    %381 = vmatprep.subr.mxu0 0.0
    %382 = vmatpush1.xpose.msra.mxu0 0.0
    %383 = vmatprep.subr.mxu0 0.0
    %384 = vmatpush1.xpose.msra.mxu0 0.0
    %385 = vmatprep.subr.mxu0 0.0
    %386 = vmatpush1.xpose.msra.mxu0 0.0
    %387 = vmatprep.subr.mxu0 0.0
    %388 = vmatpush1.xpose.msra.mxu0 0.0
    %389 = vmatprep.subr.mxu0 0.0
    %390 = vmatpush1.xpose.msra.mxu0 0.0
    %391 = vmatprep.subr.mxu0 0.0
    %392 = vmatpush1.xpose.msra.mxu0 0.0
    %393 = vmatprep.subr.mxu0 0.0
    %394 = vmatpush1.xpose.msra.mxu0 0.0
    %395 = vmatprep.subr.mxu0 0.0
    %396 = vmatpush1.xpose.msra.mxu0 0.0
    %397 = vmatprep.subr.mxu0 0.0
    %398 = vmatpush1.xpose.msra.mxu0 0.0
    %399 = vmatprep.subr.mxu0 0.0
    %400 = vmatpush1.xpose.msra.mxu0 0.0
    %401 = vmatprep.subr.mxu0 0.0
    %402 = vmatpush1.xpose.msra.mxu0 0.0
    %403 = vmatprep.subr.mxu0 0.0
    %404 = vmatpush1.xpose.msra.mxu0 0.0
    %405 = vmatprep.subr.mxu0 0.0
    %406 = vmatpush1.xpose.msra.mxu0 0.0
    %407 = vmatprep.subr.mxu0 0.0
    %408 = vmatpush1.xpose.msra.mxu0 0.0
    %409 = vmatprep.subr.mxu0 0.0
    %410 = vmatpush1.xpose.msra.mxu0 0.0
    %411 = vmatprep.subr.mxu0 0.0
    %412 = vmatpush1.xpose.msra.mxu0 0.0
    %413 = vmatprep.subr.mxu0 0.0
    %414 = vmatpush1.xpose.msra.mxu0 0.0
    %415 = vmatprep.subr.mxu0 0.0
    %416 = vmatpush1.xpose.msra.mxu0 0.0
    %417 = vmatprep.subr.mxu0 0.0
    %418 = vmatpush1.xpose.msra.mxu0 0.0
    %419 = vmatprep.subr.mxu0 0.0
    %420 = vmatpush1.xpose.msra.mxu0 0.0
    %421 = vmatprep.subr.mxu0 0.0
    %422 = vmatpush1.xpose.msra.mxu0 0.0
    %423 = vmatprep.subr.mxu0 0.0
    %424 = vmatpush1.xpose.msra.mxu0 0.0
    %425 = vmatprep.subr.mxu0 0.0
    %426 = vmatpush1.xpose.msra.mxu0 0.0
    %427 = vmatprep.subr.mxu0 0.0
    %428 = vmatpush1.xpose.msra.mxu0 0.0
    %429 = vmatprep.subr.mxu0 0.0
    %430 = vmatpush1.xpose.msra.mxu0 0.0
    %431 = vmatprep.subr.mxu0 0.0
    %432 = vmatpush1.xpose.msra.mxu0 0.0
    %433 = vmatprep.subr.mxu0 0.0
    %434 = vmatpush1.xpose.msra.mxu0 0.0
    %435 = vmatprep.subr.mxu0 0.0
    %436 = vmatpush1.xpose.msra.mxu0 0.0
    %437 = vmatprep.subr.mxu0 0.0
    %438 = vmatpush1.xpose.msra.mxu0 0.0
    %439 = vmatprep.subr.mxu0 0.0
    %440 = vmatpush1.xpose.msra.mxu0 0.0
    %441 = vmatprep.mubr.f32.mxu0 0.0
    %442 = vmatmul.mubr.f32.gmra.mrb[0].mxu0 %v326
    %v443 = vpop.f32.mrb[0].mxu0
    %v444 = vadd.f32 0.0, %v443
    %v445 = vpop.f32.mrb[0].mxu0
    %446 = vmatprep.mubr.f32.mxu0 0.0
    %447 = vmatmul.mubr.f32.gmra.mrb[0].mxu0 %v329
    %v448 = vpop.f32.mrb[0].mxu0
    %v449 = vadd.f32 0.0, %v448
    %v450 = vpop.f32.mrb[0].mxu0
    %451 = vmatprep.mubr.f32.mxu0 0.0
    %452 = vmatmul.mubr.f32.gmra.mrb[0].mxu0 %v332
    %v453 = vpop.f32.mrb[0].mxu0
    %v454 = vadd.f32 0.0, %v453
    %v455 = vpop.f32.mrb[0].mxu0
    %456 = vmatprep.mubr.f32.mxu0 0.0
    %457 = vmatmul.mubr.f32.gmra.mrb[0].mxu0 %v335
    %v458 = vpop.f32.mrb[0].mxu0
    %v459 = vadd.f32 0.0, %v458
    %v460 = vpop.f32.mrb[0].mxu0
    %461 = vmatprep.mubr.f32.mxu0 0.0
    %462 = vmatmul.mubr.f32.gmra.mrb[0].mxu0 %v338
    %v463 = vpop.f32.mrb[0].mxu0
    %v464 = vadd.f32 0.0, %v463
    %v465 = vpop.f32.mrb[0].mxu0
    %466 = vmatprep.mubr.f32.mxu0 0.0
    %467 = vmatmul.mubr.f32.gmra.mrb[0].mxu0 %v341
    %v468 = vpop.f32.mrb[0].mxu0
    %v469 = vadd.f32 0.0, %v468
    %v470 = vpop.f32.mrb[0].mxu0
    %471 = vmatprep.mubr.f32.mxu0 0.0
    %472 = vmatmul.mubr.f32.gmra.mrb[0].mxu0 %v344
    %v473 = vpop.f32.mrb[0].mxu0
    %v474 = vadd.f32 0.0, %v473
    %v475 = vpop.f32.mrb[0].mxu0
    %476 = vmatprep.mubr.f32.mxu0 0.0
    %477 = vmatmul.mubr.f32.gmra.mrb[0].mxu0 %v347
    %v478 = vpop.f32.mrb[0].mxu0
    %v479 = vadd.f32 0.0, %v478
    %v480 = vpop.f32.mrb[0].mxu0
    %481 = vmatprep.mubr.f32.mxu0 0.0
    %482 = vmatmul.mubr.f32.gmra.mrb[0].mxu0 %v350
    %v483 = vpop.f32.mrb[0].mxu0
    %v484 = vadd.f32 0.0, %v483
    %v485 = vpop.f32.mrb[0].mxu0
    %486 = vmatprep.mubr.f32.mxu0 0.0
    %487 = vmatmul.mubr.f32.gmra.mrb[0].mxu0 %v353
    %v488 = vpop.f32.mrb[0].mxu0
    %v489 = vadd.f32 0.0, %v488
    %v490 = vpop.f32.mrb[0].mxu0
    %491 = vmatprep.mubr.f32.mxu0 0.0
    %492 = vmatmul.mubr.f32.gmra.mrb[0].mxu0 %v356
    %v493 = vpop.f32.mrb[0].mxu0
    %v494 = vadd.f32 0.0, %v493
    %v495 = vpop.f32.mrb[0].mxu0
    %496 = vmatprep.mubr.f32.mxu0 0.0
    %497 = vmatmul.mubr.f32.gmra.mrb[0].mxu0 %v359
    %v498 = vpop.f32.mrb[0].mxu0
    %v499 = vadd.f32 0.0, %v498
    %v500 = vpop.f32.mrb[0].mxu0
    %501 = vmatprep.mubr.f32.mxu0 0.0
    %502 = vmatmul.mubr.f32.gmra.mrb[0].mxu0 %v362
    %v503 = vpop.f32.mrb[0].mxu0
    %v504 = vadd.f32 0.0, %v503
    %v505 = vpop.f32.mrb[0].mxu0
    %506 = vmatprep.mubr.f32.mxu0 0.0
    %507 = vmatmul.mubr.f32.gmra.mrb[0].mxu0 %v365
    %v508 = vpop.f32.mrb[0].mxu0
    %v509 = vadd.f32 0.0, %v508
    %v510 = vpop.f32.mrb[0].mxu0
    %511 = vmatprep.mubr.f32.mxu0 0.0
    %512 = vmatmul.mubr.f32.gmra.mrb[0].mxu0 %v368
    %v513 = vpop.f32.mrb[0].mxu0
    %v514 = vadd.f32 0.0, %v513
    %v515 = vpop.f32.mrb[0].mxu0
    %516 = vmatprep.mubr.f32.mxu0 0.0
    %517 = vmatmul.mubr.f32.gmra.mrb[0].mxu0 %v371
    %v518 = vpop.f32.mrb[0].mxu0
    %v519 = vadd.f32 0.0, %v518
    %v520 = vpop.f32.mrb[0].mxu0
    %521 = vdwg.mxu0
    %v522 = vmul.f32 %v444, 1.442695
    %v523 = vpow.pop %v522
    %v524 = vmul.f32 %v449, 1.442695
    %v525 = vpow.pop %v524
    %v526 = vmul.f32 %v454, 1.442695
    %v527 = vpow.pop %v526
    %v528 = vmul.f32 %v459, 1.442695
    %v529 = vpow.pop %v528
    %v530 = vmul.f32 %v464, 1.442695
    %v531 = vpow.pop %v530
    %v532 = vmul.f32 %v469, 1.442695
    %v533 = vpow.pop %v532
    %v534 = vmul.f32 %v474, 1.442695
    %v535 = vpow.pop %v534
    %v536 = vmul.f32 %v479, 1.442695
    %v537 = vpow.pop %v536
    %v538 = vmul.f32 %v484, 1.442695
    %v539 = vpow.pop %v538
    %v540 = vmul.f32 %v489, 1.442695
    %v541 = vpow.pop %v540
    %v542 = vmul.f32 %v494, 1.442695
    %v543 = vpow.pop %v542
    %v544 = vmul.f32 %v499, 1.442695
    %v545 = vpow.pop %v544
    %v546 = vmul.f32 %v504, 1.442695
    %v547 = vpow.pop %v546
    %v548 = vmul.f32 %v509, 1.442695
    %v549 = vpow.pop %v548
    %v550 = vmul.f32 %v514, 1.442695
    %v551 = vpow.pop %v550
    %v552 = vmul.f32 %v519, 1.442695
    %v553 = vpow.pop %v552
    %570 = vrot.lane.b32.xlu0 %v28, 64
    %v571 = vpop.permute.xlu0 %570
    %572 = vrot.lane.b32.xlu0 %v29, 64
    %v573 = vpop.permute.xlu0 %572
    %574 = vrot.lane.b32.xlu0 %v30, 64
    %v575 = vpop.permute.xlu0 %574
    %576 = vrot.lane.b32.xlu0 %v31, 64
    %v577 = vpop.permute.xlu0 %576
    %578 = vrot.lane.b32.xlu0 %v32, 64
    %v579 = vpop.permute.xlu0 %578
    %580 = vrot.lane.b32.xlu0 %v33, 64
    %v581 = vpop.permute.xlu0 %580
    %582 = vrot.lane.b32.xlu0 %v34, 64
    %v583 = vpop.permute.xlu0 %582
    %584 = vrot.lane.b32.xlu0 %v35, 64
    %v585 = vpop.permute.xlu0 %584
    %586 = vrot.lane.b32.xlu0 %v36, 64
    %v587 = vpop.permute.xlu0 %586
    %588 = vrot.lane.b32.xlu0 %v37, 64
    %v589 = vpop.permute.xlu0 %588
    %590 = vrot.lane.b32.xlu0 %v38, 64
    %v591 = vpop.permute.xlu0 %590
    %592 = vrot.lane.b32.xlu0 %v39, 64
    %v593 = vpop.permute.xlu0 %592
    %594 = vrot.lane.b32.xlu0 %v40, 64
    %v595 = vpop.permute.xlu0 %594
    %596 = vrot.lane.b32.xlu0 %v41, 64
    %v597 = vpop.permute.xlu0 %596
    %598 = vrot.lane.b32.xlu0 %v42, 64
    %v599 = vpop.permute.xlu0 %598
    %600 = vrot.lane.b32.xlu0 %v43, 64
    %v601 = vpop.permute.xlu0 %600
    %v618 = vmul.f32 %v523, %v571
    %v619 = vmul.f32 %v525, %v573
    %v620 = vmul.f32 %v527, %v575
    %v621 = vmul.f32 %v529, %v577
    %v622 = vmul.f32 %v531, %v579
    %v623 = vmul.f32 %v533, %v581
    %v624 = vmul.f32 %v535, %v583
    %v625 = vmul.f32 %v537, %v585
    %v626 = vmul.f32 %v539, %v587
    %v627 = vmul.f32 %v541, %v589
    %v628 = vmul.f32 %v543, %v591
    %v629 = vmul.f32 %v545, %v593
    %v630 = vmul.f32 %v547, %v595
    %v631 = vmul.f32 %v549, %v597
    %v632 = vmul.f32 %v551, %v599
    %v633 = vmul.f32 %v553, %v601
    %vm634 = vcmask 130048
    %v635 = vsel %vm634, %v618, 0.0
    %636 = vadd.xlane.f32.xlu0 %v635
    %v637 = vpop.xlane.xlu0 %636
    %v638 = vsel %vm634, %v619, 0.0
    %639 = vadd.xlane.f32.xlu0 %v638
    %v640 = vpop.xlane.xlu0 %639
    %v641 = vsel %vm634, %v620, 0.0
    %642 = vadd.xlane.f32.xlu0 %v641
    %v643 = vpop.xlane.xlu0 %642
    %v644 = vsel %vm634, %v621, 0.0
    %645 = vadd.xlane.f32.xlu0 %v644
    %v646 = vpop.xlane.xlu0 %645
    %v647 = vsel %vm634, %v622, 0.0
    %648 = vadd.xlane.f32.xlu0 %v647
    %v649 = vpop.xlane.xlu0 %648
    %v650 = vsel %vm634, %v623, 0.0
    %651 = vadd.xlane.f32.xlu0 %v650
    %v652 = vpop.xlane.xlu0 %651
    %v653 = vsel %vm634, %v624, 0.0
    %654 = vadd.xlane.f32.xlu0 %v653
    %v655 = vpop.xlane.xlu0 %654
    %v656 = vsel %vm634, %v625, 0.0
    %657 = vadd.xlane.f32.xlu0 %v656
    %v658 = vpop.xlane.xlu0 %657
    %v659 = vsel %vm634, %v626, 0.0
    %660 = vadd.xlane.f32.xlu0 %v659
    %v661 = vpop.xlane.xlu0 %660
    %v662 = vsel %vm634, %v627, 0.0
    %663 = vadd.xlane.f32.xlu0 %v662
    %v664 = vpop.xlane.xlu0 %663
    %v665 = vsel %vm634, %v628, 0.0
    %666 = vadd.xlane.f32.xlu0 %v665
    %v667 = vpop.xlane.xlu0 %666
    %v668 = vsel %vm634, %v629, 0.0
    %669 = vadd.xlane.f32.xlu0 %v668
    %v670 = vpop.xlane.xlu0 %669
    %v671 = vsel %vm634, %v630, 0.0
    %672 = vadd.xlane.f32.xlu0 %v671
    %v673 = vpop.xlane.xlu0 %672
    %v674 = vsel %vm634, %v631, 0.0
    %675 = vadd.xlane.f32.xlu0 %v674
    %v676 = vpop.xlane.xlu0 %675
    %v677 = vsel %vm634, %v632, 0.0
    %678 = vadd.xlane.f32.xlu0 %v677
    %v679 = vpop.xlane.xlu0 %678
    %v680 = vsel %vm634, %v633, 0.0
    %681 = vadd.xlane.f32.xlu0 %v680
    %v682 = vpop.xlane.xlu0 %681
    %v683 = vrcp.pop %v637
    %v684 = vrcp.pop %v640
    %v685 = vrcp.pop %v643
    %v686 = vrcp.pop %v646
    %v687 = vrcp.pop %v649
    %v688 = vrcp.pop %v652
    %v689 = vrcp.pop %v655
    %v690 = vrcp.pop %v658
    %v691 = vrcp.pop %v661
    %v692 = vrcp.pop %v664
    %v693 = vrcp.pop %v667
    %v694 = vrcp.pop %v670
    %v695 = vrcp.pop %v673
    %v696 = vrcp.pop %v676
    %v697 = vrcp.pop %v679
    %v698 = vrcp.pop %v682
    %v699 = vmul.f32 %v618, %v683
    %v700 = vmul.f32 %v619, %v684
    %v701 = vmul.f32 %v620, %v685
    %v702 = vmul.f32 %v621, %v686
    %v703 = vmul.f32 %v622, %v687
    %v704 = vmul.f32 %v623, %v688
    %v705 = vmul.f32 %v624, %v689
    %v706 = vmul.f32 %v625, %v690
    %v707 = vmul.f32 %v626, %v691
    %v708 = vmul.f32 %v627, %v692
    %v709 = vmul.f32 %v628, %v693
    %v710 = vmul.f32 %v629, %v694
    %v711 = vmul.f32 %v630, %v695
    %v712 = vmul.f32 %v631, %v696
    %v713 = vmul.f32 %v632, %v697
    %v714 = vmul.f32 %v633, %v698
    %v716 = vsel %vm634, %v699, 0
    %v719 = vsel %vm634, %v700, 0
    %v722 = vsel %vm634, %v701, 0
    %v725 = vsel %vm634, %v702, 0
    %v728 = vsel %vm634, %v703, 0
    %v731 = vsel %vm634, %v704, 0
    %v734 = vsel %vm634, %v705, 0
    %v737 = vsel %vm634, %v706, 0
    %v740 = vsel %vm634, %v707, 0
    %v743 = vsel %vm634, %v708, 0
    %v746 = vsel %vm634, %v709, 0
    %v749 = vsel %vm634, %v710, 0
    %v752 = vsel %vm634, %v711, 0
    %v755 = vsel %vm634, %v712, 0
    %v758 = vsel %vm634, %v713, 0
    %v761 = vsel %vm634, %v714, 0
    %763 = vmatprep.subr.mxu0 0.0
    %764 = vmatpush1.msra.mxu0 %v295
    %765 = vmatprep.subr.mxu0 0.0
    %766 = vmatpush1.msra.mxu0 %v301
    %767 = vmatprep.subr.mxu0 0.0
    %768 = vmatpush1.msra.mxu0 0.0
    %769 = vmatprep.subr.mxu0 0.0
    %770 = vmatpush1.msra.mxu0 0.0
    %771 = vmatprep.subr.mxu0 0.0
    %772 = vmatpush1.msra.mxu0 0.0
    %773 = vmatprep.subr.mxu0 0.0
    %774 = vmatpush1.msra.mxu0 0.0
    %775 = vmatprep.subr.mxu0 0.0
    %776 = vmatpush1.msra.mxu0 0.0
    %777 = vmatprep.subr.mxu0 0.0
    %778 = vmatpush1.msra.mxu0 0.0
    %779 = vmatprep.subr.mxu0 0.0
    %780 = vmatpush1.msra.mxu0 0.0
    %781 = vmatprep.subr.mxu0 0.0
    %782 = vmatpush1.msra.mxu0 0.0
    %783 = vmatprep.subr.mxu0 0.0
    %784 = vmatpush1.msra.mxu0 0.0
    %785 = vmatprep.subr.mxu0 0.0
    %786 = vmatpush1.msra.mxu0 0.0
    %787 = vmatprep.subr.mxu0 0.0
    %788 = vmatpush1.msra.mxu0 0.0
    %789 = vmatprep.subr.mxu0 0.0
    %790 = vmatpush1.msra.mxu0 0.0
    %791 = vmatprep.subr.mxu0 0.0
    %792 = vmatpush1.msra.mxu0 0.0
    %793 = vmatprep.subr.mxu0 0.0
    %794 = vmatpush1.msra.mxu0 0.0
    %795 = vmatprep.subr.mxu0 0.0
    %796 = vmatpush1.msra.mxu0 0.0
    %797 = vmatprep.subr.mxu0 0.0
    %798 = vmatpush1.msra.mxu0 0.0
    %799 = vmatprep.subr.mxu0 0.0
    %800 = vmatpush1.msra.mxu0 0.0
    %801 = vmatprep.subr.mxu0 0.0
    %802 = vmatpush1.msra.mxu0 0.0
    %803 = vmatprep.subr.mxu0 0.0
    %804 = vmatpush1.msra.mxu0 0.0
    %805 = vmatprep.subr.mxu0 0.0
    %806 = vmatpush1.msra.mxu0 0.0
    %807 = vmatprep.subr.mxu0 0.0
    %808 = vmatpush1.msra.mxu0 0.0
    %809 = vmatprep.subr.mxu0 0.0
    %810 = vmatpush1.msra.mxu0 0.0
    %811 = vmatprep.subr.mxu0 0.0
    %812 = vmatpush1.msra.mxu0 0.0
    %813 = vmatprep.subr.mxu0 0.0
    %814 = vmatpush1.msra.mxu0 0.0
    %815 = vmatprep.subr.mxu0 0.0
    %816 = vmatpush1.msra.mxu0 0.0
    %817 = vmatprep.subr.mxu0 0.0
    %818 = vmatpush1.msra.mxu0 0.0
    %819 = vmatprep.subr.mxu0 0.0
    %820 = vmatpush1.msra.mxu0 0.0
    %821 = vmatprep.subr.mxu0 0.0
    %822 = vmatpush1.msra.mxu0 0.0
    %823 = vmatprep.subr.mxu0 0.0
    %824 = vmatpush1.msra.mxu0 0.0
    %825 = vmatprep.subr.mxu0 0.0
    %826 = vmatpush1.msra.mxu0 0.0
    %827 = vmatprep.mubr.f32.mxu0 0.0
    %828 = vmatmul.mubr.f32.gmra.mrb[0].mxu0 %v716
    %v829 = vpop.f32.mrb[0].mxu0
    %v830 = vadd.f32 0.0, %v829
    %v831 = vpop.f32.mrb[0].mxu0
    %832 = vmatprep.mubr.f32.mxu0 0.0
    %833 = vmatmul.mubr.f32.gmra.mrb[0].mxu0 %v719
    %v834 = vpop.f32.mrb[0].mxu0
    %v835 = vadd.f32 0.0, %v834
    %v836 = vpop.f32.mrb[0].mxu0
    %837 = vmatprep.mubr.f32.mxu0 0.0
    %838 = vmatmul.mubr.f32.gmra.mrb[0].mxu0 %v722
    %v839 = vpop.f32.mrb[0].mxu0
    %v840 = vadd.f32 0.0, %v839
    %v841 = vpop.f32.mrb[0].mxu0
    %842 = vmatprep.mubr.f32.mxu0 0.0
    %843 = vmatmul.mubr.f32.gmra.mrb[0].mxu0 %v725
    %v844 = vpop.f32.mrb[0].mxu0
    %v845 = vadd.f32 0.0, %v844
    %v846 = vpop.f32.mrb[0].mxu0
    %847 = vmatprep.mubr.f32.mxu0 0.0
    %848 = vmatmul.mubr.f32.gmra.mrb[0].mxu0 %v728
    %v849 = vpop.f32.mrb[0].mxu0
    %v850 = vadd.f32 0.0, %v849
    %v851 = vpop.f32.mrb[0].mxu0
    %852 = vmatprep.mubr.f32.mxu0 0.0
    %853 = vmatmul.mubr.f32.gmra.mrb[0].mxu0 %v731
    %v854 = vpop.f32.mrb[0].mxu0
    %v855 = vadd.f32 0.0, %v854
    %v856 = vpop.f32.mrb[0].mxu0
    %857 = vmatprep.mubr.f32.mxu0 0.0
    %858 = vmatmul.mubr.f32.gmra.mrb[0].mxu0 %v734
    %v859 = vpop.f32.mrb[0].mxu0
    %v860 = vadd.f32 0.0, %v859
    %v861 = vpop.f32.mrb[0].mxu0
    %862 = vmatprep.mubr.f32.mxu0 0.0
    %863 = vmatmul.mubr.f32.gmra.mrb[0].mxu0 %v737
    %v864 = vpop.f32.mrb[0].mxu0
    %v865 = vadd.f32 0.0, %v864
    %v866 = vpop.f32.mrb[0].mxu0
    %867 = vmatprep.mubr.f32.mxu0 0.0
    %868 = vmatmul.mubr.f32.gmra.mrb[0].mxu0 %v740
    %v869 = vpop.f32.mrb[0].mxu0
    %v870 = vadd.f32 0.0, %v869
    %v871 = vpop.f32.mrb[0].mxu0
    %872 = vmatprep.mubr.f32.mxu0 0.0
    %873 = vmatmul.mubr.f32.gmra.mrb[0].mxu0 %v743
    %v874 = vpop.f32.mrb[0].mxu0
    %v875 = vadd.f32 0.0, %v874
    %v876 = vpop.f32.mrb[0].mxu0
    %877 = vmatprep.mubr.f32.mxu0 0.0
    %878 = vmatmul.mubr.f32.gmra.mrb[0].mxu0 %v746
    %v879 = vpop.f32.mrb[0].mxu0
    %v880 = vadd.f32 0.0, %v879
    %v881 = vpop.f32.mrb[0].mxu0
    %882 = vmatprep.mubr.f32.mxu0 0.0
    %883 = vmatmul.mubr.f32.gmra.mrb[0].mxu0 %v749
    %v884 = vpop.f32.mrb[0].mxu0
    %v885 = vadd.f32 0.0, %v884
    %v886 = vpop.f32.mrb[0].mxu0
    %887 = vmatprep.mubr.f32.mxu0 0.0
    %888 = vmatmul.mubr.f32.gmra.mrb[0].mxu0 %v752
    %v889 = vpop.f32.mrb[0].mxu0
    %v890 = vadd.f32 0.0, %v889
    %v891 = vpop.f32.mrb[0].mxu0
    %892 = vmatprep.mubr.f32.mxu0 0.0
    %893 = vmatmul.mubr.f32.gmra.mrb[0].mxu0 %v755
    %v894 = vpop.f32.mrb[0].mxu0
    %v895 = vadd.f32 0.0, %v894
    %v896 = vpop.f32.mrb[0].mxu0
    %897 = vmatprep.mubr.f32.mxu0 0.0
    %898 = vmatmul.mubr.f32.gmra.mrb[0].mxu0 %v758
    %v899 = vpop.f32.mrb[0].mxu0
    %v900 = vadd.f32 0.0, %v899
    %v901 = vpop.f32.mrb[0].mxu0
    %902 = vmatprep.mubr.f32.mxu0 0.0
    %903 = vmatmul.mubr.f32.gmra.mrb[0].mxu0 %v761
    %v904 = vpop.f32.mrb[0].mxu0
    %v905 = vadd.f32 0.0, %v904
    %v906 = vpop.f32.mrb[0].mxu0
    %907 = vdwg.mxu0
    %v908 = vmul.f32 %v830, %v28
    %v909 = vmul.f32 %v835, %v29
    %v910 = vmul.f32 %v840, %v30
    %v911 = vmul.f32 %v845, %v31
    %v912 = vmul.f32 %v850, %v32
    %v913 = vmul.f32 %v855, %v33
    %v914 = vmul.f32 %v860, %v34
    %v915 = vmul.f32 %v865, %v35
    %v916 = vmul.f32 %v870, %v36
    %v917 = vmul.f32 %v875, %v37
    %v918 = vmul.f32 %v880, %v38
    %v919 = vmul.f32 %v885, %v39
    %v920 = vmul.f32 %v890, %v40
    %v921 = vmul.f32 %v895, %v41
    %v922 = vmul.f32 %v900, %v42
    %v923 = vmul.f32 %v905, %v43
    %v924 = vadd.f32 %v908, %v910
    %v925 = vadd.f32 %v909, %v911
    %v926 = vadd.f32 %v924, %v912
    %v927 = vadd.f32 %v925, %v913
    %v928 = vadd.f32 %v926, %v914
    %v929 = vadd.f32 %v927, %v915
    %v930 = vadd.f32 %v928, %v916
    %v931 = vadd.f32 %v929, %v917
    %v932 = vadd.f32 %v930, %v918
    %v933 = vadd.f32 %v931, %v919
    %v934 = vadd.f32 %v932, %v920
    %v935 = vadd.f32 %v933, %v921
    %v936 = vadd.f32 %v934, %v922
    %v937 = vadd.f32 %v935, %v923
    %v938 = vlaneseq
    %v939 = vshrl.u32 %v938, 7
    %v940 = vsub.s32 0, %v939
    %v941 = vrot.slane %v160, %v940
    %950 = vrot.lane.b32.xlu0 %v205, 64
    %v951 = vpop.permute.xlu0 %950
    %952 = vrot.lane.b32.xlu0 %v207, 64
    %v953 = vpop.permute.xlu0 %952
    %954 = vrot.lane.b32.xlu0 %v209, 64
    %v955 = vpop.permute.xlu0 %954
    %956 = vrot.lane.b32.xlu0 %v211, 64
    %v957 = vpop.permute.xlu0 %956
    %958 = vrot.lane.b32.xlu0 %v213, 64
    %v959 = vpop.permute.xlu0 %958
    %960 = vrot.lane.b32.xlu0 %v215, 64
    %v961 = vpop.permute.xlu0 %960
    %962 = vrot.lane.b32.xlu0 %v217, 64
    %v963 = vpop.permute.xlu0 %962
    %964 = vrot.lane.b32.xlu0 %v219, 64
    %v965 = vpop.permute.xlu0 %964
    %v975 = vsel %vm164, %v936, 0
    %v978 = vsel %vm164, %v937, 0
    %980 = vmatprep.subr.mxu0 0.0
    %981 = vmatpush1.msra.mxu0 %v951
    %982 = vmatprep.subr.mxu0 0.0
    %983 = vmatpush1.msra.mxu0 %v953
    %984 = vmatprep.subr.mxu0 0.0
    %985 = vmatpush1.msra.mxu0 %v955
    %986 = vmatprep.subr.mxu0 0.0
    %987 = vmatpush1.msra.mxu0 %v957
    %988 = vmatprep.subr.mxu0 0.0
    %989 = vmatpush1.msra.mxu0 %v959
    %990 = vmatprep.subr.mxu0 0.0
    %991 = vmatpush1.msra.mxu0 %v961
    %992 = vmatprep.subr.mxu0 0.0
    %993 = vmatpush1.msra.mxu0 %v963
    %994 = vmatprep.subr.mxu0 0.0
    %995 = vmatpush1.msra.mxu0 %v965
    %996 = vmatprep.subr.mxu0 0.0
    %997 = vmatpush1.msra.mxu0 0.0
    %998 = vmatprep.subr.mxu0 0.0
    %999 = vmatpush1.msra.mxu0 0.0
    %1000 = vmatprep.subr.mxu0 0.0
    %1001 = vmatpush1.msra.mxu0 0.0
    %1002 = vmatprep.subr.mxu0 0.0
    %1003 = vmatpush1.msra.mxu0 0.0
    %1004 = vmatprep.subr.mxu0 0.0
    %1005 = vmatpush1.msra.mxu0 0.0
    %1006 = vmatprep.subr.mxu0 0.0
    %1007 = vmatpush1.msra.mxu0 0.0
    %1008 = vmatprep.subr.mxu0 0.0
    %1009 = vmatpush1.msra.mxu0 0.0
    %1010 = vmatprep.subr.mxu0 0.0
    %1011 = vmatpush1.msra.mxu0 0.0
    %1012 = vmatprep.subr.mxu0 0.0
    %1013 = vmatpush1.msra.mxu0 0.0
    %1014 = vmatprep.subr.mxu0 0.0
    %1015 = vmatpush1.msra.mxu0 0.0
    %1016 = vmatprep.subr.mxu0 0.0
    %1017 = vmatpush1.msra.mxu0 0.0
    %1018 = vmatprep.subr.mxu0 0.0
    %1019 = vmatpush1.msra.mxu0 0.0
    %1020 = vmatprep.subr.mxu0 0.0
    %1021 = vmatpush1.msra.mxu0 0.0
    %1022 = vmatprep.subr.mxu0 0.0
    %1023 = vmatpush1.msra.mxu0 0.0
    %1024 = vmatprep.subr.mxu0 0.0
    %1025 = vmatpush1.msra.mxu0 0.0
    %1026 = vmatprep.subr.mxu0 0.0
    %1027 = vmatpush1.msra.mxu0 0.0
    %1028 = vmatprep.subr.mxu0 0.0
    %1029 = vmatpush1.msra.mxu0 0.0
    %1030 = vmatprep.subr.mxu0 0.0
    %1031 = vmatpush1.msra.mxu0 0.0
    %1032 = vmatprep.subr.mxu0 0.0
    %1033 = vmatpush1.msra.mxu0 0.0
    %1034 = vmatprep.subr.mxu0 0.0
    %1035 = vmatpush1.msra.mxu0 0.0
    %1036 = vmatprep.subr.mxu0 0.0
    %1037 = vmatpush1.msra.mxu0 0.0
    %1038 = vmatprep.subr.mxu0 0.0
    %1039 = vmatpush1.msra.mxu0 0.0
    %1040 = vmatprep.subr.mxu0 0.0
    %1041 = vmatpush1.msra.mxu0 0.0
    %1042 = vmatprep.subr.mxu0 0.0
    %1043 = vmatpush1.msra.mxu0 0.0
    %1044 = vmatprep.mubr.f32.mxu0 0.0
    %1045 = vmatmul.mubr.f32.gmra.mrb[0].mxu0 %v975
    %v1046 = vpop.f32.mrb[0].mxu0
    %v1047 = vadd.f32 %v941, %v1046
    %v1048 = vpop.f32.mrb[0].mxu0
    %1049 = vmatprep.mubr.f32.mxu0 0.0
    %1050 = vmatmul.mubr.f32.gmra.mrb[0].mxu0 %v978
    %v1051 = vpop.f32.mrb[0].mxu0
    %v1052 = vadd.f32 %v941, %v1051
    %v1053 = vpop.f32.mrb[0].mxu0
    %1054 = vdwg.mxu0
    %v1055 = vadd.f32 %v158, %v1047
    %v1056 = vadd.f32 %v140, %v1052
    %v1057 = vsel %vm164, %v1055, 0.0
    %1058 = vadd.xlane.f32.xlu0 %v1057
    %v1059 = vpop.xlane.xlu0 %1058
    %v1060 = vsel %vm164, %v1056, 0.0
    %1061 = vadd.xlane.f32.xlu0 %v1060
    %v1062 = vpop.xlane.xlu0 %1061
    %v1063 = vmul.f32 %v1059, %v171
    %v1064 = vmul.f32 %v1062, %v171
    %v1065 = vsub.f32 %v1055, %v1063
    %v1066 = vsub.f32 %v1056, %v1064
    %v1067 = vmul.f32 %v1065, %v1065
    %v1068 = vmul.f32 %v1066, %v1066
    %v1069 = vsel %vm164, %v1067, 0.0
    %1070 = vadd.xlane.f32.xlu0 %v1069
    %v1071 = vpop.xlane.xlu0 %1070
    %v1072 = vsel %vm164, %v1068, 0.0
    %1073 = vadd.xlane.f32.xlu0 %v1072
    %v1074 = vpop.xlane.xlu0 %1073
    %v1075 = vmul.f32 %v1071, %v171
    %v1076 = vmul.f32 %v1074, %v171
    %v1077 = vadd.f32 %v1075, 1e-05
    %v1078 = vadd.f32 %v1076, 1e-05
    %v1079 = vrsqrt.pop %v1077
    %v1080 = vrsqrt.pop %v1078
    %v1081 = vmul.f32 %v1065, %v1079
    %v1082 = vmul.f32 %v1066, %v1080
    %1084 = vrot.lane.b32.xlu0 %v941, 64
    %v1085 = vpop.permute.xlu0 %1084
    %v1087 = vmul.f32 %v1081, %v1085
    %v1088 = vmul.f32 %v1082, %v1085
    %v1089 = vlaneseq
    %v1090 = vshrl.u32 %v1089, 7
    %v1091 = vsub.s32 0, %v1090
    %v1092 = vrot.slane %v161, %v1091
    %v1093 = vadd.f32 %v1087, %v1092
    %v1094 = vadd.f32 %v1088, %v1092
    %v1095 = vld [vmem:[%s5 + $0x10] sm:$0xff]
    %v1096 = vld [vmem:[%s5 + $0x28] sm:$0xff]
    %v1097 = vld [vmem:[%s5 + $0x40] sm:$0xff]
    %v1098 = vld [vmem:[%s5 + $0x58] sm:$0xff]
    %v1099 = vld [vmem:[%s5 + $0x70] sm:$0xff]
    %v1100 = vld [vmem:[%s5 + $0x88] sm:$0xff]
    %v1101 = vld [vmem:[%s5 + $0xa0] sm:$0xff]
    %v1102 = vld [vmem:[%s5 + $0xb8] sm:$0xff]
    %v1104 = vlaneseq
    %v1105 = vshrl.u32 %v1104, 7
    %v1106 = vsub.s32 0, %v1105
    %v1107 = vrot.slane %v162, %v1106
    %v1108 = vlaneseq
    %v1109 = vshrl.u32 %v1108, 7
    %v1110 = vsub.s32 2, %v1109
    %v1111 = vrot.slane %v162, %v1110
    %v1114 = vlaneseq
    %v1115 = vshrl.u32 %v1114, 7
    %v1116 = vsub.s32 0, %v1115
    %v1117 = vrot.slane %v1107, %v1116
    %v1118 = vlaneseq
    %v1119 = vshrl.u32 %v1118, 7
    %v1120 = vsub.s32 0, %v1119
    %v1121 = vrot.slane %v1111, %v1120
    %1124 = vrot.lane.b32.xlu0 %v1117, 64
    %v1125 = vpop.permute.xlu0 %1124
    %1126 = vrot.lane.b32.xlu0 %v1121, 64
    %v1127 = vpop.permute.xlu0 %1126
    %v1128 = vsel %vm164, %v1125, %v1127
    %v1131 = vsel %vm164, %v1093, 0
    %v1134 = vsel %vm164, %v1094, 0
    %1136 = vmatprep.subr.mxu0 0.0
    %1137 = vmatpush1.msra.mxu0 %v1095
    %1138 = vmatprep.subr.mxu0 0.0
    %1139 = vmatpush1.msra.mxu0 %v1096
    %1140 = vmatprep.subr.mxu0 0.0
    %1141 = vmatpush1.msra.mxu0 %v1097
    %1142 = vmatprep.subr.mxu0 0.0
    %1143 = vmatpush1.msra.mxu0 %v1098
    %1144 = vmatprep.subr.mxu0 0.0
    %1145 = vmatpush1.msra.mxu0 %v1099
    %1146 = vmatprep.subr.mxu0 0.0
    %1147 = vmatpush1.msra.mxu0 %v1100
    %1148 = vmatprep.subr.mxu0 0.0
    %1149 = vmatpush1.msra.mxu0 %v1101
    %1150 = vmatprep.subr.mxu0 0.0
    %1151 = vmatpush1.msra.mxu0 %v1102
    %1152 = vmatprep.subr.mxu0 0.0
    %1153 = vmatpush1.msra.mxu0 0.0
    %1154 = vmatprep.subr.mxu0 0.0
    %1155 = vmatpush1.msra.mxu0 0.0
    %1156 = vmatprep.subr.mxu0 0.0
    %1157 = vmatpush1.msra.mxu0 0.0
    %1158 = vmatprep.subr.mxu0 0.0
    %1159 = vmatpush1.msra.mxu0 0.0
    %1160 = vmatprep.subr.mxu0 0.0
    %1161 = vmatpush1.msra.mxu0 0.0
    %1162 = vmatprep.subr.mxu0 0.0
    %1163 = vmatpush1.msra.mxu0 0.0
    %1164 = vmatprep.subr.mxu0 0.0
    %1165 = vmatpush1.msra.mxu0 0.0
    %1166 = vmatprep.subr.mxu0 0.0
    %1167 = vmatpush1.msra.mxu0 0.0
    %1168 = vmatprep.subr.mxu0 0.0
    %1169 = vmatpush1.msra.mxu0 0.0
    %1170 = vmatprep.subr.mxu0 0.0
    %1171 = vmatpush1.msra.mxu0 0.0
    %1172 = vmatprep.subr.mxu0 0.0
    %1173 = vmatpush1.msra.mxu0 0.0
    %1174 = vmatprep.subr.mxu0 0.0
    %1175 = vmatpush1.msra.mxu0 0.0
    %1176 = vmatprep.subr.mxu0 0.0
    %1177 = vmatpush1.msra.mxu0 0.0
    %1178 = vmatprep.subr.mxu0 0.0
    %1179 = vmatpush1.msra.mxu0 0.0
    %1180 = vmatprep.subr.mxu0 0.0
    %1181 = vmatpush1.msra.mxu0 0.0
    %1182 = vmatprep.subr.mxu0 0.0
    %1183 = vmatpush1.msra.mxu0 0.0
    %1184 = vmatprep.subr.mxu0 0.0
    %1185 = vmatpush1.msra.mxu0 0.0
    %1186 = vmatprep.subr.mxu0 0.0
    %1187 = vmatpush1.msra.mxu0 0.0
    %1188 = vmatprep.subr.mxu0 0.0
    %1189 = vmatpush1.msra.mxu0 0.0
    %1190 = vmatprep.subr.mxu0 0.0
    %1191 = vmatpush1.msra.mxu0 0.0
    %1192 = vmatprep.subr.mxu0 0.0
    %1193 = vmatpush1.msra.mxu0 0.0
    %1194 = vmatprep.subr.mxu0 0.0
    %1195 = vmatpush1.msra.mxu0 0.0
    %1196 = vmatprep.subr.mxu0 0.0
    %1197 = vmatpush1.msra.mxu0 0.0
    %1198 = vmatprep.subr.mxu0 0.0
    %1199 = vmatpush1.msra.mxu0 0.0
    %1200 = vmatprep.mubr.f32.mxu0 0.0
    %1201 = vmatmul.mubr.f32.gmra.mrb[0].mxu0 %v1131
    %v1202 = vpop.f32.mrb[0].mxu0
    %v1203 = vadd.f32 %v1128, %v1202
    %v1204 = vpop.f32.mrb[0].mxu0
    %1205 = vmatprep.mubr.f32.mxu0 0.0
    %1206 = vmatmul.mubr.f32.gmra.mrb[0].mxu0 %v1134
    %v1207 = vpop.f32.mrb[0].mxu0
    %v1208 = vadd.f32 %v1128, %v1207
    %v1209 = vpop.f32.mrb[0].mxu0
    %1210 = vdwg.mxu0
    %v1211 = vmax.f32 %v1203, 0.0
    %v1212 = vmax.f32 %v1208, 0.0
    %v1213 = vld [vmem:[%s6] sm:$0xff]
    %v1214 = vld [vmem:[%s6 + $0x8] sm:$0xff]
    %v1215 = vld [vmem:[%s6 + $0x10] sm:$0xff]
    %v1216 = vld [vmem:[%s6 + $0x18] sm:$0xff]
    %v1217 = vld [vmem:[%s6 + $0x20] sm:$0xff]
    %v1218 = vld [vmem:[%s6 + $0x28] sm:$0xff]
    %v1219 = vld [vmem:[%s6 + $0x30] sm:$0xff]
    %v1220 = vld [vmem:[%s6 + $0x38] sm:$0xff]
    %v1221 = vld [vmem:[%s6 + $0x40] sm:$0xff]
    %v1222 = vld [vmem:[%s6 + $0x48] sm:$0xff]
    %v1223 = vld [vmem:[%s6 + $0x50] sm:$0xff]
    %v1224 = vld [vmem:[%s6 + $0x58] sm:$0xff]
    %v1225 = vld [vmem:[%s6 + $0x60] sm:$0xff]
    %v1226 = vld [vmem:[%s6 + $0x68] sm:$0xff]
    %v1227 = vld [vmem:[%s6 + $0x70] sm:$0xff]
    %v1228 = vld [vmem:[%s6 + $0x78] sm:$0xff]
    %v1229 = vlaneseq
    %v1230 = vshrl.u32 %v1229, 7
    %v1231 = vsub.s32 0, %v1230
    %v1232 = vrot.slane %v163, %v1231
    %1234 = vrot.lane.b32.xlu0 %v1232, 64
    %v1235 = vpop.permute.xlu0 %1234
    %1237 = vmatprep.subr.mxu0 0.0
    %1238 = vmatpush1.msra.mxu0 %v1213
    %1239 = vmatprep.subr.mxu0 0.0
    %1240 = vmatpush1.msra.mxu0 %v1214
    %1241 = vmatprep.subr.mxu0 0.0
    %1242 = vmatpush1.msra.mxu0 %v1215
    %1243 = vmatprep.subr.mxu0 0.0
    %1244 = vmatpush1.msra.mxu0 %v1216
    %1245 = vmatprep.subr.mxu0 0.0
    %1246 = vmatpush1.msra.mxu0 %v1217
    %1247 = vmatprep.subr.mxu0 0.0
    %1248 = vmatpush1.msra.mxu0 %v1218
    %1249 = vmatprep.subr.mxu0 0.0
    %1250 = vmatpush1.msra.mxu0 %v1219
    %1251 = vmatprep.subr.mxu0 0.0
    %1252 = vmatpush1.msra.mxu0 %v1220
    %1253 = vmatprep.subr.mxu0 0.0
    %1254 = vmatpush1.msra.mxu0 %v1221
    %1255 = vmatprep.subr.mxu0 0.0
    %1256 = vmatpush1.msra.mxu0 %v1222
    %1257 = vmatprep.subr.mxu0 0.0
    %1258 = vmatpush1.msra.mxu0 %v1223
    %1259 = vmatprep.subr.mxu0 0.0
    %1260 = vmatpush1.msra.mxu0 %v1224
    %1261 = vmatprep.subr.mxu0 0.0
    %1262 = vmatpush1.msra.mxu0 %v1225
    %1263 = vmatprep.subr.mxu0 0.0
    %1264 = vmatpush1.msra.mxu0 %v1226
    %1265 = vmatprep.subr.mxu0 0.0
    %1266 = vmatpush1.msra.mxu0 %v1227
    %1267 = vmatprep.subr.mxu0 0.0
    %1268 = vmatpush1.msra.mxu0 %v1228
    %1269 = vmatprep.subr.mxu0 0.0
    %1270 = vmatpush1.msra.mxu0 0.0
    %1271 = vmatprep.subr.mxu0 0.0
    %1272 = vmatpush1.msra.mxu0 0.0
    %1273 = vmatprep.subr.mxu0 0.0
    %1274 = vmatpush1.msra.mxu0 0.0
    %1275 = vmatprep.subr.mxu0 0.0
    %1276 = vmatpush1.msra.mxu0 0.0
    %1277 = vmatprep.subr.mxu0 0.0
    %1278 = vmatpush1.msra.mxu0 0.0
    %1279 = vmatprep.subr.mxu0 0.0
    %1280 = vmatpush1.msra.mxu0 0.0
    %1281 = vmatprep.subr.mxu0 0.0
    %1282 = vmatpush1.msra.mxu0 0.0
    %1283 = vmatprep.subr.mxu0 0.0
    %1284 = vmatpush1.msra.mxu0 0.0
    %1285 = vmatprep.subr.mxu0 0.0
    %1286 = vmatpush1.msra.mxu0 0.0
    %1287 = vmatprep.subr.mxu0 0.0
    %1288 = vmatpush1.msra.mxu0 0.0
    %1289 = vmatprep.subr.mxu0 0.0
    %1290 = vmatpush1.msra.mxu0 0.0
    %1291 = vmatprep.subr.mxu0 0.0
    %1292 = vmatpush1.msra.mxu0 0.0
    %1293 = vmatprep.subr.mxu0 0.0
    %1294 = vmatpush1.msra.mxu0 0.0
    %1295 = vmatprep.subr.mxu0 0.0
    %1296 = vmatpush1.msra.mxu0 0.0
    %1297 = vmatprep.subr.mxu0 0.0
    %1298 = vmatpush1.msra.mxu0 0.0
    %1299 = vmatprep.subr.mxu0 0.0
    %1300 = vmatpush1.msra.mxu0 0.0
    %1301 = vmatprep.mubr.f32.mxu0 0.0
    %1302 = vmatmul.mubr.f32.gmra.mrb[0].mxu0 %v1211
    %v1303 = vpop.f32.mrb[0].mxu0
    %v1304 = vadd.f32 %v1235, %v1303
    %v1305 = vpop.f32.mrb[0].mxu0
    %1306 = vmatprep.mubr.f32.mxu0 0.0
    %1307 = vmatmul.mubr.f32.gmra.mrb[0].mxu0 %v1212
    %v1308 = vpop.f32.mrb[0].mxu0
    %v1309 = vadd.f32 %v1235, %v1308
    %v1310 = vpop.f32.mrb[0].mxu0
    %1311 = vdwg.mxu0
    %v1312 = vadd.f32 %v1055, %v1304
    %v1313 = vadd.f32 %v1056, %v1309
    %v1314 = vld [vmem:[%s4 + $0x1] sm:$0x1]
    %v1315 = vld [vmem:[%s4 + $0x3] sm:$0x1]
    %v1316 = vld [vmem:[%s4 + $0x5] sm:$0x1]
    %v1317 = vld [vmem:[%s4 + $0x5] sm:$0x5]
    %v1318 = vld [vmem:[%s4 + $0x7] sm:$0x1]
    %v1319 = vsel %vm164, %v1312, 0.0
    %1320 = vadd.xlane.f32.xlu0 %v1319
    %v1321 = vpop.xlane.xlu0 %1320
    %v1322 = vsel %vm164, %v1313, 0.0
    %1323 = vadd.xlane.f32.xlu0 %v1322
    %v1324 = vpop.xlane.xlu0 %1323
    %v1325 = vmul.f32 %v1321, %v171
    %v1326 = vmul.f32 %v1324, %v171
    %v1327 = vsub.f32 %v1312, %v1325
    %v1328 = vsub.f32 %v1313, %v1326
    %v1329 = vmul.f32 %v1327, %v1327
    %v1330 = vmul.f32 %v1328, %v1328
    %v1331 = vsel %vm164, %v1329, 0.0
    %1332 = vadd.xlane.f32.xlu0 %v1331
    %v1333 = vpop.xlane.xlu0 %1332
    %v1334 = vsel %vm164, %v1330, 0.0
    %1335 = vadd.xlane.f32.xlu0 %v1334
    %v1336 = vpop.xlane.xlu0 %1335
    %v1337 = vmul.f32 %v1333, %v171
    %v1338 = vmul.f32 %v1336, %v171
    %v1339 = vadd.f32 %v1337, 1e-05
    %v1340 = vadd.f32 %v1338, 1e-05
    %v1341 = vrsqrt.pop %v1339
    %v1342 = vrsqrt.pop %v1340
    %v1343 = vmul.f32 %v1327, %v1341
    %v1344 = vmul.f32 %v1328, %v1342
    %v1345 = vlaneseq
    %v1346 = vshrl.u32 %v1345, 7
    %v1347 = vsub.s32 0, %v1346
    %v1348 = vrot.slane %v1314, %v1347
    %v1349 = vmul.f32 %v1343, %v1348
    %v1350 = vmul.f32 %v1344, %v1348
    %1352 = vrot.lane.b32.xlu0 %v1348, 64
    %v1353 = vpop.permute.xlu0 %1352
    %v1355 = vadd.f32 %v1349, %v1353
    %v1356 = vadd.f32 %v1350, %v1353
    %s1357 = scalar_lea.vmem %s5, 192
    %v1358 = vld [vmem:[%s1357] sm:$0xff]
    %v1359 = vld [vmem:[%s1357 + $0x8] sm:$0xff]
    %v1360 = vld [vmem:[%s1357 + $0x18] sm:$0xff]
    %v1361 = vld [vmem:[%s1357 + $0x20] sm:$0xff]
    %v1362 = vld [vmem:[%s1357 + $0x30] sm:$0xff]
    %v1363 = vld [vmem:[%s1357 + $0x38] sm:$0xff]
    %v1364 = vld [vmem:[%s1357 + $0x48] sm:$0xff]
    %v1365 = vld [vmem:[%s1357 + $0x50] sm:$0xff]
    %v1366 = vld [vmem:[%s1357 + $0x60] sm:$0xff]
    %v1367 = vld [vmem:[%s1357 + $0x68] sm:$0xff]
    %v1368 = vld [vmem:[%s1357 + $0x78] sm:$0xff]
    %v1369 = vld [vmem:[%s1357 + $0x80] sm:$0xff]
    %v1370 = vld [vmem:[%s1357 + $0x90] sm:$0xff]
    %v1371 = vld [vmem:[%s1357 + $0x98] sm:$0xff]
    %v1372 = vld [vmem:[%s1357 + $0xa8] sm:$0xff]
    %v1373 = vld [vmem:[%s1357 + $0xb0] sm:$0xff]
    %v1375 = vsel %vm164, %v1355, 0
    %v1378 = vsel %vm164, %v1356, 0
    %1380 = vmatprep.subr.mxu0 %v1359
    %1381 = vmatpush1.msra.mxu0 %v1358
    %1382 = vmatprep.subr.mxu0 %v1361
    %1383 = vmatpush1.msra.mxu0 %v1360
    %1384 = vmatprep.subr.mxu0 %v1363
    %1385 = vmatpush1.msra.mxu0 %v1362
    %1386 = vmatprep.subr.mxu0 %v1365
    %1387 = vmatpush1.msra.mxu0 %v1364
    %1388 = vmatprep.subr.mxu0 %v1367
    %1389 = vmatpush1.msra.mxu0 %v1366
    %1390 = vmatprep.subr.mxu0 %v1369
    %1391 = vmatpush1.msra.mxu0 %v1368
    %1392 = vmatprep.subr.mxu0 %v1371
    %1393 = vmatpush1.msra.mxu0 %v1370
    %1394 = vmatprep.subr.mxu0 %v1373
    %1395 = vmatpush1.msra.mxu0 %v1372
    %1396 = vmatprep.subr.mxu0 0.0
    %1397 = vmatpush1.msra.mxu0 0.0
    %1398 = vmatprep.subr.mxu0 0.0
    %1399 = vmatpush1.msra.mxu0 0.0
    %1400 = vmatprep.subr.mxu0 0.0
    %1401 = vmatpush1.msra.mxu0 0.0
    %1402 = vmatprep.subr.mxu0 0.0
    %1403 = vmatpush1.msra.mxu0 0.0
    %1404 = vmatprep.subr.mxu0 0.0
    %1405 = vmatpush1.msra.mxu0 0.0
    %1406 = vmatprep.subr.mxu0 0.0
    %1407 = vmatpush1.msra.mxu0 0.0
    %1408 = vmatprep.subr.mxu0 0.0
    %1409 = vmatpush1.msra.mxu0 0.0
    %1410 = vmatprep.subr.mxu0 0.0
    %1411 = vmatpush1.msra.mxu0 0.0
    %1412 = vmatprep.subr.mxu0 0.0
    %1413 = vmatpush1.msra.mxu0 0.0
    %1414 = vmatprep.subr.mxu0 0.0
    %1415 = vmatpush1.msra.mxu0 0.0
    %1416 = vmatprep.subr.mxu0 0.0
    %1417 = vmatpush1.msra.mxu0 0.0
    %1418 = vmatprep.subr.mxu0 0.0
    %1419 = vmatpush1.msra.mxu0 0.0
    %1420 = vmatprep.subr.mxu0 0.0
    %1421 = vmatpush1.msra.mxu0 0.0
    %1422 = vmatprep.subr.mxu0 0.0
    %1423 = vmatpush1.msra.mxu0 0.0
    %1424 = vmatprep.subr.mxu0 0.0
    %1425 = vmatpush1.msra.mxu0 0.0
    %1426 = vmatprep.subr.mxu0 0.0
    %1427 = vmatpush1.msra.mxu0 0.0
    %1428 = vmatprep.subr.mxu0 0.0
    %1429 = vmatpush1.msra.mxu0 0.0
    %1430 = vmatprep.subr.mxu0 0.0
    %1431 = vmatpush1.msra.mxu0 0.0
    %1432 = vmatprep.subr.mxu0 0.0
    %1433 = vmatpush1.msra.mxu0 0.0
    %1434 = vmatprep.subr.mxu0 0.0
    %1435 = vmatpush1.msra.mxu0 0.0
    %1436 = vmatprep.subr.mxu0 0.0
    %1437 = vmatpush1.msra.mxu0 0.0
    %1438 = vmatprep.subr.mxu0 0.0
    %1439 = vmatpush1.msra.mxu0 0.0
    %1440 = vmatprep.subr.mxu0 0.0
    %1441 = vmatpush1.msra.mxu0 0.0
    %1442 = vmatprep.subr.mxu0 0.0
    %1443 = vmatpush1.msra.mxu0 0.0
    %1444 = vmatprep.mubr.f32.mxu0 0.0
    %1445 = vmatmul.mubr.f32.gmra.mrb[0].mxu0 %v1375
    %v1446 = vpop.f32.mrb[0].mxu0
    %v1447 = vadd.f32 0.0, %v1446
    %v1448 = vpop.f32.mrb[0].mxu0
    %v1449 = vadd.f32 0.0, %v1448
    %1450 = vmatprep.mubr.f32.mxu0 0.0
    %1451 = vmatmul.mubr.f32.gmra.mrb[0].mxu0 %v1378
    %v1452 = vpop.f32.mrb[0].mxu0
    %v1453 = vadd.f32 0.0, %v1452
    %v1454 = vpop.f32.mrb[0].mxu0
    %v1455 = vadd.f32 0.0, %v1454
    %1456 = vdwg.mxu0
    %v1457 = vmul.f32 %v1447, %v28
    %v1458 = vmul.f32 %v1453, %v29
    %v1459 = vmul.f32 %v1447, %v30
    %v1460 = vmul.f32 %v1453, %v31
    %v1461 = vmul.f32 %v1447, %v32
    %v1462 = vmul.f32 %v1453, %v33
    %v1463 = vmul.f32 %v1447, %v34
    %v1464 = vmul.f32 %v1453, %v35
    %v1465 = vmul.f32 %v1447, %v36
    %v1466 = vmul.f32 %v1453, %v37
    %v1467 = vmul.f32 %v1447, %v38
    %v1468 = vmul.f32 %v1453, %v39
    %v1469 = vmul.f32 %v1447, %v40
    %v1470 = vmul.f32 %v1453, %v41
    %v1471 = vmul.f32 %v1447, %v42
    %v1472 = vmul.f32 %v1453, %v43
    %1475 = vrot.lane.b32.xlu0 %v1447, 64
    %v1476 = vpop.permute.xlu0 %1475
    %1477 = vrot.lane.b32.xlu0 %v1453, 64
    %v1478 = vpop.permute.xlu0 %1477
    %v1480 = vsel %vm164, %v1457, 0
    %v1483 = vsel %vm164, %v1458, 0
    %v1486 = vsel %vm164, %v1459, 0
    %v1489 = vsel %vm164, %v1460, 0
    %v1492 = vsel %vm164, %v1461, 0
    %v1495 = vsel %vm164, %v1462, 0
    %v1498 = vsel %vm164, %v1463, 0
    %v1501 = vsel %vm164, %v1464, 0
    %v1504 = vsel %vm164, %v1465, 0
    %v1507 = vsel %vm164, %v1466, 0
    %v1510 = vsel %vm164, %v1467, 0
    %v1513 = vsel %vm164, %v1468, 0
    %v1516 = vsel %vm164, %v1469, 0
    %v1519 = vsel %vm164, %v1470, 0
    %v1522 = vsel %vm164, %v1471, 0
    %v1525 = vsel %vm164, %v1472, 0
    %v1527 = vsel %vm164, %v1476, 0
    %v1529 = vsel %vm164, %v1478, 0
    %1531 = vmatprep.subr.mxu0 0.0
    %1532 = vmatpush1.xpose.msra.mxu0 %v1527
    %1533 = vmatprep.subr.mxu0 0.0
    %1534 = vmatpush1.xpose.msra.mxu0 %v1529
    %1535 = vmatprep.subr.mxu0 0.0
    %1536 = vmatpush1.xpose.msra.mxu0 0.0
    %1537 = vmatprep.subr.mxu0 0.0
    %1538 = vmatpush1.xpose.msra.mxu0 0.0
    %1539 = vmatprep.subr.mxu0 0.0
    %1540 = vmatpush1.xpose.msra.mxu0 0.0
    %1541 = vmatprep.subr.mxu0 0.0
    %1542 = vmatpush1.xpose.msra.mxu0 0.0
    %1543 = vmatprep.subr.mxu0 0.0
    %1544 = vmatpush1.xpose.msra.mxu0 0.0
    %1545 = vmatprep.subr.mxu0 0.0
    %1546 = vmatpush1.xpose.msra.mxu0 0.0
    %1547 = vmatprep.subr.mxu0 0.0
    %1548 = vmatpush1.xpose.msra.mxu0 0.0
    %1549 = vmatprep.subr.mxu0 0.0
    %1550 = vmatpush1.xpose.msra.mxu0 0.0
    %1551 = vmatprep.subr.mxu0 0.0
    %1552 = vmatpush1.xpose.msra.mxu0 0.0
    %1553 = vmatprep.subr.mxu0 0.0
    %1554 = vmatpush1.xpose.msra.mxu0 0.0
    %1555 = vmatprep.subr.mxu0 0.0
    %1556 = vmatpush1.xpose.msra.mxu0 0.0
    %1557 = vmatprep.subr.mxu0 0.0
    %1558 = vmatpush1.xpose.msra.mxu0 0.0
    %1559 = vmatprep.subr.mxu0 0.0
    %1560 = vmatpush1.xpose.msra.mxu0 0.0
    %1561 = vmatprep.subr.mxu0 0.0
    %1562 = vmatpush1.xpose.msra.mxu0 0.0
    %1563 = vmatprep.subr.mxu0 0.0
    %1564 = vmatpush1.xpose.msra.mxu0 0.0
    %1565 = vmatprep.subr.mxu0 0.0
    %1566 = vmatpush1.xpose.msra.mxu0 0.0
    %1567 = vmatprep.subr.mxu0 0.0
    %1568 = vmatpush1.xpose.msra.mxu0 0.0
    %1569 = vmatprep.subr.mxu0 0.0
    %1570 = vmatpush1.xpose.msra.mxu0 0.0
    %1571 = vmatprep.subr.mxu0 0.0
    %1572 = vmatpush1.xpose.msra.mxu0 0.0
    %1573 = vmatprep.subr.mxu0 0.0
    %1574 = vmatpush1.xpose.msra.mxu0 0.0
    %1575 = vmatprep.subr.mxu0 0.0
    %1576 = vmatpush1.xpose.msra.mxu0 0.0
    %1577 = vmatprep.subr.mxu0 0.0
    %1578 = vmatpush1.xpose.msra.mxu0 0.0
    %1579 = vmatprep.subr.mxu0 0.0
    %1580 = vmatpush1.xpose.msra.mxu0 0.0
    %1581 = vmatprep.subr.mxu0 0.0
    %1582 = vmatpush1.xpose.msra.mxu0 0.0
    %1583 = vmatprep.subr.mxu0 0.0
    %1584 = vmatpush1.xpose.msra.mxu0 0.0
    %1585 = vmatprep.subr.mxu0 0.0
    %1586 = vmatpush1.xpose.msra.mxu0 0.0
    %1587 = vmatprep.subr.mxu0 0.0
    %1588 = vmatpush1.xpose.msra.mxu0 0.0
    %1589 = vmatprep.subr.mxu0 0.0
    %1590 = vmatpush1.xpose.msra.mxu0 0.0
    %1591 = vmatprep.subr.mxu0 0.0
    %1592 = vmatpush1.xpose.msra.mxu0 0.0
    %1593 = vmatprep.subr.mxu0 0.0
    %1594 = vmatpush1.xpose.msra.mxu0 0.0
    %1595 = vmatprep.mubr.f32.mxu0 0.0
    %1596 = vmatmul.mubr.f32.gmra.mrb[0].mxu0 %v1480
    %v1597 = vpop.f32.mrb[0].mxu0
    %v1598 = vadd.f32 0.0, %v1597
    %v1599 = vpop.f32.mrb[0].mxu0
    %1600 = vmatprep.mubr.f32.mxu0 0.0
    %1601 = vmatmul.mubr.f32.gmra.mrb[0].mxu0 %v1483
    %v1602 = vpop.f32.mrb[0].mxu0
    %v1603 = vadd.f32 0.0, %v1602
    %v1604 = vpop.f32.mrb[0].mxu0
    %1605 = vmatprep.mubr.f32.mxu0 0.0
    %1606 = vmatmul.mubr.f32.gmra.mrb[0].mxu0 %v1486
    %v1607 = vpop.f32.mrb[0].mxu0
    %v1608 = vadd.f32 0.0, %v1607
    %v1609 = vpop.f32.mrb[0].mxu0
    %1610 = vmatprep.mubr.f32.mxu0 0.0
    %1611 = vmatmul.mubr.f32.gmra.mrb[0].mxu0 %v1489
    %v1612 = vpop.f32.mrb[0].mxu0
    %v1613 = vadd.f32 0.0, %v1612
    %v1614 = vpop.f32.mrb[0].mxu0
    %1615 = vmatprep.mubr.f32.mxu0 0.0
    %1616 = vmatmul.mubr.f32.gmra.mrb[0].mxu0 %v1492
    %v1617 = vpop.f32.mrb[0].mxu0
    %v1618 = vadd.f32 0.0, %v1617
    %v1619 = vpop.f32.mrb[0].mxu0
    %1620 = vmatprep.mubr.f32.mxu0 0.0
    %1621 = vmatmul.mubr.f32.gmra.mrb[0].mxu0 %v1495
    %v1622 = vpop.f32.mrb[0].mxu0
    %v1623 = vadd.f32 0.0, %v1622
    %v1624 = vpop.f32.mrb[0].mxu0
    %1625 = vmatprep.mubr.f32.mxu0 0.0
    %1626 = vmatmul.mubr.f32.gmra.mrb[0].mxu0 %v1498
    %v1627 = vpop.f32.mrb[0].mxu0
    %v1628 = vadd.f32 0.0, %v1627
    %v1629 = vpop.f32.mrb[0].mxu0
    %1630 = vmatprep.mubr.f32.mxu0 0.0
    %1631 = vmatmul.mubr.f32.gmra.mrb[0].mxu0 %v1501
    %v1632 = vpop.f32.mrb[0].mxu0
    %v1633 = vadd.f32 0.0, %v1632
    %v1634 = vpop.f32.mrb[0].mxu0
    %1635 = vmatprep.mubr.f32.mxu0 0.0
    %1636 = vmatmul.mubr.f32.gmra.mrb[0].mxu0 %v1504
    %v1637 = vpop.f32.mrb[0].mxu0
    %v1638 = vadd.f32 0.0, %v1637
    %v1639 = vpop.f32.mrb[0].mxu0
    %1640 = vmatprep.mubr.f32.mxu0 0.0
    %1641 = vmatmul.mubr.f32.gmra.mrb[0].mxu0 %v1507
    %v1642 = vpop.f32.mrb[0].mxu0
    %v1643 = vadd.f32 0.0, %v1642
    %v1644 = vpop.f32.mrb[0].mxu0
    %1645 = vmatprep.mubr.f32.mxu0 0.0
    %1646 = vmatmul.mubr.f32.gmra.mrb[0].mxu0 %v1510
    %v1647 = vpop.f32.mrb[0].mxu0
    %v1648 = vadd.f32 0.0, %v1647
    %v1649 = vpop.f32.mrb[0].mxu0
    %1650 = vmatprep.mubr.f32.mxu0 0.0
    %1651 = vmatmul.mubr.f32.gmra.mrb[0].mxu0 %v1513
    %v1652 = vpop.f32.mrb[0].mxu0
    %v1653 = vadd.f32 0.0, %v1652
    %v1654 = vpop.f32.mrb[0].mxu0
    %1655 = vmatprep.mubr.f32.mxu0 0.0
    %1656 = vmatmul.mubr.f32.gmra.mrb[0].mxu0 %v1516
    %v1657 = vpop.f32.mrb[0].mxu0
    %v1658 = vadd.f32 0.0, %v1657
    %v1659 = vpop.f32.mrb[0].mxu0
    %1660 = vmatprep.mubr.f32.mxu0 0.0
    %1661 = vmatmul.mubr.f32.gmra.mrb[0].mxu0 %v1519
    %v1662 = vpop.f32.mrb[0].mxu0
    %v1663 = vadd.f32 0.0, %v1662
    %v1664 = vpop.f32.mrb[0].mxu0
    %1665 = vmatprep.mubr.f32.mxu0 0.0
    %1666 = vmatmul.mubr.f32.gmra.mrb[0].mxu0 %v1522
    %v1667 = vpop.f32.mrb[0].mxu0
    %v1668 = vadd.f32 0.0, %v1667
    %v1669 = vpop.f32.mrb[0].mxu0
    %1670 = vmatprep.mubr.f32.mxu0 0.0
    %1671 = vmatmul.mubr.f32.gmra.mrb[0].mxu0 %v1525
    %v1672 = vpop.f32.mrb[0].mxu0
    %v1673 = vadd.f32 0.0, %v1672
    %v1674 = vpop.f32.mrb[0].mxu0
    %1675 = vdwg.mxu0
    %v1676 = vmul.f32 %v1598, 1.442695
    %v1677 = vpow.pop %v1676
    %v1678 = vmul.f32 %v1603, 1.442695
    %v1679 = vpow.pop %v1678
    %v1680 = vmul.f32 %v1608, 1.442695
    %v1681 = vpow.pop %v1680
    %v1682 = vmul.f32 %v1613, 1.442695
    %v1683 = vpow.pop %v1682
    %v1684 = vmul.f32 %v1618, 1.442695
    %v1685 = vpow.pop %v1684
    %v1686 = vmul.f32 %v1623, 1.442695
    %v1687 = vpow.pop %v1686
    %v1688 = vmul.f32 %v1628, 1.442695
    %v1689 = vpow.pop %v1688
    %v1690 = vmul.f32 %v1633, 1.442695
    %v1691 = vpow.pop %v1690
    %v1692 = vmul.f32 %v1638, 1.442695
    %v1693 = vpow.pop %v1692
    %v1694 = vmul.f32 %v1643, 1.442695
    %v1695 = vpow.pop %v1694
    %v1696 = vmul.f32 %v1648, 1.442695
    %v1697 = vpow.pop %v1696
    %v1698 = vmul.f32 %v1653, 1.442695
    %v1699 = vpow.pop %v1698
    %v1700 = vmul.f32 %v1658, 1.442695
    %v1701 = vpow.pop %v1700
    %v1702 = vmul.f32 %v1663, 1.442695
    %v1703 = vpow.pop %v1702
    %v1704 = vmul.f32 %v1668, 1.442695
    %v1705 = vpow.pop %v1704
    %v1706 = vmul.f32 %v1673, 1.442695
    %v1707 = vpow.pop %v1706
    %v1708 = vmul.f32 %v1677, %v571
    %v1709 = vmul.f32 %v1679, %v573
    %v1710 = vmul.f32 %v1681, %v575
    %v1711 = vmul.f32 %v1683, %v577
    %v1712 = vmul.f32 %v1685, %v579
    %v1713 = vmul.f32 %v1687, %v581
    %v1714 = vmul.f32 %v1689, %v583
    %v1715 = vmul.f32 %v1691, %v585
    %v1716 = vmul.f32 %v1693, %v587
    %v1717 = vmul.f32 %v1695, %v589
    %v1718 = vmul.f32 %v1697, %v591
    %v1719 = vmul.f32 %v1699, %v593
    %v1720 = vmul.f32 %v1701, %v595
    %v1721 = vmul.f32 %v1703, %v597
    %v1722 = vmul.f32 %v1705, %v599
    %v1723 = vmul.f32 %v1707, %v601
    %v1724 = vsel %vm634, %v1708, 0.0
    %1725 = vadd.xlane.f32.xlu0 %v1724
    %v1726 = vpop.xlane.xlu0 %1725
    %v1727 = vsel %vm634, %v1709, 0.0
    %1728 = vadd.xlane.f32.xlu0 %v1727
    %v1729 = vpop.xlane.xlu0 %1728
    %v1730 = vsel %vm634, %v1710, 0.0
    %1731 = vadd.xlane.f32.xlu0 %v1730
    %v1732 = vpop.xlane.xlu0 %1731
    %v1733 = vsel %vm634, %v1711, 0.0
    %1734 = vadd.xlane.f32.xlu0 %v1733
    %v1735 = vpop.xlane.xlu0 %1734
    %v1736 = vsel %vm634, %v1712, 0.0
    %1737 = vadd.xlane.f32.xlu0 %v1736
    %v1738 = vpop.xlane.xlu0 %1737
    %v1739 = vsel %vm634, %v1713, 0.0
    %1740 = vadd.xlane.f32.xlu0 %v1739
    %v1741 = vpop.xlane.xlu0 %1740
    %v1742 = vsel %vm634, %v1714, 0.0
    %1743 = vadd.xlane.f32.xlu0 %v1742
    %v1744 = vpop.xlane.xlu0 %1743
    %v1745 = vsel %vm634, %v1715, 0.0
    %1746 = vadd.xlane.f32.xlu0 %v1745
    %v1747 = vpop.xlane.xlu0 %1746
    %v1748 = vsel %vm634, %v1716, 0.0
    %1749 = vadd.xlane.f32.xlu0 %v1748
    %v1750 = vpop.xlane.xlu0 %1749
    %v1751 = vsel %vm634, %v1717, 0.0
    %1752 = vadd.xlane.f32.xlu0 %v1751
    %v1753 = vpop.xlane.xlu0 %1752
    %v1754 = vsel %vm634, %v1718, 0.0
    %1755 = vadd.xlane.f32.xlu0 %v1754
    %v1756 = vpop.xlane.xlu0 %1755
    %v1757 = vsel %vm634, %v1719, 0.0
    %1758 = vadd.xlane.f32.xlu0 %v1757
    %v1759 = vpop.xlane.xlu0 %1758
    %v1760 = vsel %vm634, %v1720, 0.0
    %1761 = vadd.xlane.f32.xlu0 %v1760
    %v1762 = vpop.xlane.xlu0 %1761
    %v1763 = vsel %vm634, %v1721, 0.0
    %1764 = vadd.xlane.f32.xlu0 %v1763
    %v1765 = vpop.xlane.xlu0 %1764
    %v1766 = vsel %vm634, %v1722, 0.0
    %1767 = vadd.xlane.f32.xlu0 %v1766
    %v1768 = vpop.xlane.xlu0 %1767
    %v1769 = vsel %vm634, %v1723, 0.0
    %1770 = vadd.xlane.f32.xlu0 %v1769
    %v1771 = vpop.xlane.xlu0 %1770
    %v1772 = vrcp.pop %v1726
    %v1773 = vrcp.pop %v1729
    %v1774 = vrcp.pop %v1732
    %v1775 = vrcp.pop %v1735
    %v1776 = vrcp.pop %v1738
    %v1777 = vrcp.pop %v1741
    %v1778 = vrcp.pop %v1744
    %v1779 = vrcp.pop %v1747
    %v1780 = vrcp.pop %v1750
    %v1781 = vrcp.pop %v1753
    %v1782 = vrcp.pop %v1756
    %v1783 = vrcp.pop %v1759
    %v1784 = vrcp.pop %v1762
    %v1785 = vrcp.pop %v1765
    %v1786 = vrcp.pop %v1768
    %v1787 = vrcp.pop %v1771
    %v1788 = vmul.f32 %v1708, %v1772
    %v1789 = vmul.f32 %v1709, %v1773
    %v1790 = vmul.f32 %v1710, %v1774
    %v1791 = vmul.f32 %v1711, %v1775
    %v1792 = vmul.f32 %v1712, %v1776
    %v1793 = vmul.f32 %v1713, %v1777
    %v1794 = vmul.f32 %v1714, %v1778
    %v1795 = vmul.f32 %v1715, %v1779
    %v1796 = vmul.f32 %v1716, %v1780
    %v1797 = vmul.f32 %v1717, %v1781
    %v1798 = vmul.f32 %v1718, %v1782
    %v1799 = vmul.f32 %v1719, %v1783
    %v1800 = vmul.f32 %v1720, %v1784
    %v1801 = vmul.f32 %v1721, %v1785
    %v1802 = vmul.f32 %v1722, %v1786
    %v1803 = vmul.f32 %v1723, %v1787
    %v1805 = vsel %vm634, %v1788, 0
    %v1808 = vsel %vm634, %v1789, 0
    %v1811 = vsel %vm634, %v1790, 0
    %v1814 = vsel %vm634, %v1791, 0
    %v1817 = vsel %vm634, %v1792, 0
    %v1820 = vsel %vm634, %v1793, 0
    %v1823 = vsel %vm634, %v1794, 0
    %v1826 = vsel %vm634, %v1795, 0
    %v1829 = vsel %vm634, %v1796, 0
    %v1832 = vsel %vm634, %v1797, 0
    %v1835 = vsel %vm634, %v1798, 0
    %v1838 = vsel %vm634, %v1799, 0
    %v1841 = vsel %vm634, %v1800, 0
    %v1844 = vsel %vm634, %v1801, 0
    %v1847 = vsel %vm634, %v1802, 0
    %v1850 = vsel %vm634, %v1803, 0
    %1852 = vmatprep.subr.mxu0 0.0
    %1853 = vmatpush1.msra.mxu0 %v1449
    %1854 = vmatprep.subr.mxu0 0.0
    %1855 = vmatpush1.msra.mxu0 %v1455
    %1856 = vmatprep.subr.mxu0 0.0
    %1857 = vmatpush1.msra.mxu0 0.0
    %1858 = vmatprep.subr.mxu0 0.0
    %1859 = vmatpush1.msra.mxu0 0.0
    %1860 = vmatprep.subr.mxu0 0.0
    %1861 = vmatpush1.msra.mxu0 0.0
    %1862 = vmatprep.subr.mxu0 0.0
    %1863 = vmatpush1.msra.mxu0 0.0
    %1864 = vmatprep.subr.mxu0 0.0
    %1865 = vmatpush1.msra.mxu0 0.0
    %1866 = vmatprep.subr.mxu0 0.0
    %1867 = vmatpush1.msra.mxu0 0.0
    %1868 = vmatprep.subr.mxu0 0.0
    %1869 = vmatpush1.msra.mxu0 0.0
    %1870 = vmatprep.subr.mxu0 0.0
    %1871 = vmatpush1.msra.mxu0 0.0
    %1872 = vmatprep.subr.mxu0 0.0
    %1873 = vmatpush1.msra.mxu0 0.0
    %1874 = vmatprep.subr.mxu0 0.0
    %1875 = vmatpush1.msra.mxu0 0.0
    %1876 = vmatprep.subr.mxu0 0.0
    %1877 = vmatpush1.msra.mxu0 0.0
    %1878 = vmatprep.subr.mxu0 0.0
    %1879 = vmatpush1.msra.mxu0 0.0
    %1880 = vmatprep.subr.mxu0 0.0
    %1881 = vmatpush1.msra.mxu0 0.0
    %1882 = vmatprep.subr.mxu0 0.0
    %1883 = vmatpush1.msra.mxu0 0.0
    %1884 = vmatprep.subr.mxu0 0.0
    %1885 = vmatpush1.msra.mxu0 0.0
    %1886 = vmatprep.subr.mxu0 0.0
    %1887 = vmatpush1.msra.mxu0 0.0
    %1888 = vmatprep.subr.mxu0 0.0
    %1889 = vmatpush1.msra.mxu0 0.0
    %1890 = vmatprep.subr.mxu0 0.0
    %1891 = vmatpush1.msra.mxu0 0.0
    %1892 = vmatprep.subr.mxu0 0.0
    %1893 = vmatpush1.msra.mxu0 0.0
    %1894 = vmatprep.subr.mxu0 0.0
    %1895 = vmatpush1.msra.mxu0 0.0
    %1896 = vmatprep.subr.mxu0 0.0
    %1897 = vmatpush1.msra.mxu0 0.0
    %1898 = vmatprep.subr.mxu0 0.0
    %1899 = vmatpush1.msra.mxu0 0.0
    %1900 = vmatprep.subr.mxu0 0.0
    %1901 = vmatpush1.msra.mxu0 0.0
    %1902 = vmatprep.subr.mxu0 0.0
    %1903 = vmatpush1.msra.mxu0 0.0
    %1904 = vmatprep.subr.mxu0 0.0
    %1905 = vmatpush1.msra.mxu0 0.0
    %1906 = vmatprep.subr.mxu0 0.0
    %1907 = vmatpush1.msra.mxu0 0.0
    %1908 = vmatprep.subr.mxu0 0.0
    %1909 = vmatpush1.msra.mxu0 0.0
    %1910 = vmatprep.subr.mxu0 0.0
    %1911 = vmatpush1.msra.mxu0 0.0
    %1912 = vmatprep.subr.mxu0 0.0
    %1913 = vmatpush1.msra.mxu0 0.0
    %1914 = vmatprep.subr.mxu0 0.0
    %1915 = vmatpush1.msra.mxu0 0.0
    %1916 = vmatprep.mubr.f32.mxu0 0.0
    %1917 = vmatmul.mubr.f32.gmra.mrb[0].mxu0 %v1805
    %v1918 = vpop.f32.mrb[0].mxu0
    %v1919 = vadd.f32 0.0, %v1918
    %v1920 = vpop.f32.mrb[0].mxu0
    %1921 = vmatprep.mubr.f32.mxu0 0.0
    %1922 = vmatmul.mubr.f32.gmra.mrb[0].mxu0 %v1808
    %v1923 = vpop.f32.mrb[0].mxu0
    %v1924 = vadd.f32 0.0, %v1923
    %v1925 = vpop.f32.mrb[0].mxu0
    %1926 = vmatprep.mubr.f32.mxu0 0.0
    %1927 = vmatmul.mubr.f32.gmra.mrb[0].mxu0 %v1811
    %v1928 = vpop.f32.mrb[0].mxu0
    %v1929 = vadd.f32 0.0, %v1928
    %v1930 = vpop.f32.mrb[0].mxu0
    %1931 = vmatprep.mubr.f32.mxu0 0.0
    %1932 = vmatmul.mubr.f32.gmra.mrb[0].mxu0 %v1814
    %v1933 = vpop.f32.mrb[0].mxu0
    %v1934 = vadd.f32 0.0, %v1933
    %v1935 = vpop.f32.mrb[0].mxu0
    %1936 = vmatprep.mubr.f32.mxu0 0.0
    %1937 = vmatmul.mubr.f32.gmra.mrb[0].mxu0 %v1817
    %v1938 = vpop.f32.mrb[0].mxu0
    %v1939 = vadd.f32 0.0, %v1938
    %v1940 = vpop.f32.mrb[0].mxu0
    %1941 = vmatprep.mubr.f32.mxu0 0.0
    %1942 = vmatmul.mubr.f32.gmra.mrb[0].mxu0 %v1820
    %v1943 = vpop.f32.mrb[0].mxu0
    %v1944 = vadd.f32 0.0, %v1943
    %v1945 = vpop.f32.mrb[0].mxu0
    %1946 = vmatprep.mubr.f32.mxu0 0.0
    %1947 = vmatmul.mubr.f32.gmra.mrb[0].mxu0 %v1823
    %v1948 = vpop.f32.mrb[0].mxu0
    %v1949 = vadd.f32 0.0, %v1948
    %v1950 = vpop.f32.mrb[0].mxu0
    %1951 = vmatprep.mubr.f32.mxu0 0.0
    %1952 = vmatmul.mubr.f32.gmra.mrb[0].mxu0 %v1826
    %v1953 = vpop.f32.mrb[0].mxu0
    %v1954 = vadd.f32 0.0, %v1953
    %v1955 = vpop.f32.mrb[0].mxu0
    %1956 = vmatprep.mubr.f32.mxu0 0.0
    %1957 = vmatmul.mubr.f32.gmra.mrb[0].mxu0 %v1829
    %v1958 = vpop.f32.mrb[0].mxu0
    %v1959 = vadd.f32 0.0, %v1958
    %v1960 = vpop.f32.mrb[0].mxu0
    %1961 = vmatprep.mubr.f32.mxu0 0.0
    %1962 = vmatmul.mubr.f32.gmra.mrb[0].mxu0 %v1832
    %v1963 = vpop.f32.mrb[0].mxu0
    %v1964 = vadd.f32 0.0, %v1963
    %v1965 = vpop.f32.mrb[0].mxu0
    %1966 = vmatprep.mubr.f32.mxu0 0.0
    %1967 = vmatmul.mubr.f32.gmra.mrb[0].mxu0 %v1835
    %v1968 = vpop.f32.mrb[0].mxu0
    %v1969 = vadd.f32 0.0, %v1968
    %v1970 = vpop.f32.mrb[0].mxu0
    %1971 = vmatprep.mubr.f32.mxu0 0.0
    %1972 = vmatmul.mubr.f32.gmra.mrb[0].mxu0 %v1838
    %v1973 = vpop.f32.mrb[0].mxu0
    %v1974 = vadd.f32 0.0, %v1973
    %v1975 = vpop.f32.mrb[0].mxu0
    %1976 = vmatprep.mubr.f32.mxu0 0.0
    %1977 = vmatmul.mubr.f32.gmra.mrb[0].mxu0 %v1841
    %v1978 = vpop.f32.mrb[0].mxu0
    %v1979 = vadd.f32 0.0, %v1978
    %v1980 = vpop.f32.mrb[0].mxu0
    %1981 = vmatprep.mubr.f32.mxu0 0.0
    %1982 = vmatmul.mubr.f32.gmra.mrb[0].mxu0 %v1844
    %v1983 = vpop.f32.mrb[0].mxu0
    %v1984 = vadd.f32 0.0, %v1983
    %v1985 = vpop.f32.mrb[0].mxu0
    %1986 = vmatprep.mubr.f32.mxu0 0.0
    %1987 = vmatmul.mubr.f32.gmra.mrb[0].mxu0 %v1847
    %v1988 = vpop.f32.mrb[0].mxu0
    %v1989 = vadd.f32 0.0, %v1988
    %v1990 = vpop.f32.mrb[0].mxu0
    %1991 = vmatprep.mubr.f32.mxu0 0.0
    %1992 = vmatmul.mubr.f32.gmra.mrb[0].mxu0 %v1850
    %v1993 = vpop.f32.mrb[0].mxu0
    %v1994 = vadd.f32 0.0, %v1993
    %v1995 = vpop.f32.mrb[0].mxu0
    %1996 = vdwg.mxu0
    %v1997 = vmul.f32 %v1919, %v28
    %v1998 = vmul.f32 %v1924, %v29
    %v1999 = vmul.f32 %v1929, %v30
    %v2000 = vmul.f32 %v1934, %v31
    %v2001 = vmul.f32 %v1939, %v32
    %v2002 = vmul.f32 %v1944, %v33
    %v2003 = vmul.f32 %v1949, %v34
    %v2004 = vmul.f32 %v1954, %v35
    %v2005 = vmul.f32 %v1959, %v36
    %v2006 = vmul.f32 %v1964, %v37
    %v2007 = vmul.f32 %v1969, %v38
    %v2008 = vmul.f32 %v1974, %v39
    %v2009 = vmul.f32 %v1979, %v40
    %v2010 = vmul.f32 %v1984, %v41
    %v2011 = vmul.f32 %v1989, %v42
    %v2012 = vmul.f32 %v1994, %v43
    %v2013 = vadd.f32 %v1997, %v1999
    %v2014 = vadd.f32 %v1998, %v2000
    %v2015 = vadd.f32 %v2013, %v2001
    %v2016 = vadd.f32 %v2014, %v2002
    %v2017 = vadd.f32 %v2015, %v2003
    %v2018 = vadd.f32 %v2016, %v2004
    %v2019 = vadd.f32 %v2017, %v2005
    %v2020 = vadd.f32 %v2018, %v2006
    %v2021 = vadd.f32 %v2019, %v2007
    %v2022 = vadd.f32 %v2020, %v2008
    %v2023 = vadd.f32 %v2021, %v2009
    %v2024 = vadd.f32 %v2022, %v2010
    %v2025 = vadd.f32 %v2023, %v2011
    %v2026 = vadd.f32 %v2024, %v2012
    %v2027 = vlaneseq
    %v2028 = vshrl.u32 %v2027, 7
    %v2029 = vsub.s32 0, %v2028
    %v2030 = vrot.slane %v1315, %v2029
    %2039 = vrot.lane.b32.xlu0 %v1359, 64
    %v2040 = vpop.permute.xlu0 %2039
    %2041 = vrot.lane.b32.xlu0 %v1361, 64
    %v2042 = vpop.permute.xlu0 %2041
    %2043 = vrot.lane.b32.xlu0 %v1363, 64
    %v2044 = vpop.permute.xlu0 %2043
    %2045 = vrot.lane.b32.xlu0 %v1365, 64
    %v2046 = vpop.permute.xlu0 %2045
    %2047 = vrot.lane.b32.xlu0 %v1367, 64
    %v2048 = vpop.permute.xlu0 %2047
    %2049 = vrot.lane.b32.xlu0 %v1369, 64
    %v2050 = vpop.permute.xlu0 %2049
    %2051 = vrot.lane.b32.xlu0 %v1371, 64
    %v2052 = vpop.permute.xlu0 %2051
    %2053 = vrot.lane.b32.xlu0 %v1373, 64
    %v2054 = vpop.permute.xlu0 %2053
    %v2064 = vsel %vm164, %v2025, 0
    %v2067 = vsel %vm164, %v2026, 0
    %2069 = vmatprep.subr.mxu0 0.0
    %2070 = vmatpush1.msra.mxu0 %v2040
    %2071 = vmatprep.subr.mxu0 0.0
    %2072 = vmatpush1.msra.mxu0 %v2042
    %2073 = vmatprep.subr.mxu0 0.0
    %2074 = vmatpush1.msra.mxu0 %v2044
    %2075 = vmatprep.subr.mxu0 0.0
    %2076 = vmatpush1.msra.mxu0 %v2046
    %2077 = vmatprep.subr.mxu0 0.0
    %2078 = vmatpush1.msra.mxu0 %v2048
    %2079 = vmatprep.subr.mxu0 0.0
    %2080 = vmatpush1.msra.mxu0 %v2050
    %2081 = vmatprep.subr.mxu0 0.0
    %2082 = vmatpush1.msra.mxu0 %v2052
    %2083 = vmatprep.subr.mxu0 0.0
    %2084 = vmatpush1.msra.mxu0 %v2054
    %2085 = vmatprep.subr.mxu0 0.0
    %2086 = vmatpush1.msra.mxu0 0.0
    %2087 = vmatprep.subr.mxu0 0.0
    %2088 = vmatpush1.msra.mxu0 0.0
    %2089 = vmatprep.subr.mxu0 0.0
    %2090 = vmatpush1.msra.mxu0 0.0
    %2091 = vmatprep.subr.mxu0 0.0
    %2092 = vmatpush1.msra.mxu0 0.0
    %2093 = vmatprep.subr.mxu0 0.0
    %2094 = vmatpush1.msra.mxu0 0.0
    %2095 = vmatprep.subr.mxu0 0.0
    %2096 = vmatpush1.msra.mxu0 0.0
    %2097 = vmatprep.subr.mxu0 0.0
    %2098 = vmatpush1.msra.mxu0 0.0
    %2099 = vmatprep.subr.mxu0 0.0
    %2100 = vmatpush1.msra.mxu0 0.0
    %2101 = vmatprep.subr.mxu0 0.0
    %2102 = vmatpush1.msra.mxu0 0.0
    %2103 = vmatprep.subr.mxu0 0.0
    %2104 = vmatpush1.msra.mxu0 0.0
    %2105 = vmatprep.subr.mxu0 0.0
    %2106 = vmatpush1.msra.mxu0 0.0
    %2107 = vmatprep.subr.mxu0 0.0
    %2108 = vmatpush1.msra.mxu0 0.0
    %2109 = vmatprep.subr.mxu0 0.0
    %2110 = vmatpush1.msra.mxu0 0.0
    %2111 = vmatprep.subr.mxu0 0.0
    %2112 = vmatpush1.msra.mxu0 0.0
    %2113 = vmatprep.subr.mxu0 0.0
    %2114 = vmatpush1.msra.mxu0 0.0
    %2115 = vmatprep.subr.mxu0 0.0
    %2116 = vmatpush1.msra.mxu0 0.0
    %2117 = vmatprep.subr.mxu0 0.0
    %2118 = vmatpush1.msra.mxu0 0.0
    %2119 = vmatprep.subr.mxu0 0.0
    %2120 = vmatpush1.msra.mxu0 0.0
    %2121 = vmatprep.subr.mxu0 0.0
    %2122 = vmatpush1.msra.mxu0 0.0
    %2123 = vmatprep.subr.mxu0 0.0
    %2124 = vmatpush1.msra.mxu0 0.0
    %2125 = vmatprep.subr.mxu0 0.0
    %2126 = vmatpush1.msra.mxu0 0.0
    %2127 = vmatprep.subr.mxu0 0.0
    %2128 = vmatpush1.msra.mxu0 0.0
    %2129 = vmatprep.subr.mxu0 0.0
    %2130 = vmatpush1.msra.mxu0 0.0
    %2131 = vmatprep.subr.mxu0 0.0
    %2132 = vmatpush1.msra.mxu0 0.0
    %2133 = vmatprep.mubr.f32.mxu0 0.0
    %2134 = vmatmul.mubr.f32.gmra.mrb[0].mxu0 %v2064
    %v2135 = vpop.f32.mrb[0].mxu0
    %v2136 = vadd.f32 %v2030, %v2135
    %v2137 = vpop.f32.mrb[0].mxu0
    %2138 = vmatprep.mubr.f32.mxu0 0.0
    %2139 = vmatmul.mubr.f32.gmra.mrb[0].mxu0 %v2067
    %v2140 = vpop.f32.mrb[0].mxu0
    %v2141 = vadd.f32 %v2030, %v2140
    %v2142 = vpop.f32.mrb[0].mxu0
    %2143 = vdwg.mxu0
    %v2144 = vadd.f32 %v1312, %v2136
    %v2145 = vadd.f32 %v1313, %v2141
    %v2146 = vsel %vm164, %v2144, 0.0
    %2147 = vadd.xlane.f32.xlu0 %v2146
    %v2148 = vpop.xlane.xlu0 %2147
    %v2149 = vsel %vm164, %v2145, 0.0
    %2150 = vadd.xlane.f32.xlu0 %v2149
    %v2151 = vpop.xlane.xlu0 %2150
    %v2152 = vmul.f32 %v2148, %v171
    %v2153 = vmul.f32 %v2151, %v171
    %v2154 = vsub.f32 %v2144, %v2152
    %v2155 = vsub.f32 %v2145, %v2153
    %v2156 = vmul.f32 %v2154, %v2154
    %v2157 = vmul.f32 %v2155, %v2155
    %v2158 = vsel %vm164, %v2156, 0.0
    %2159 = vadd.xlane.f32.xlu0 %v2158
    %v2160 = vpop.xlane.xlu0 %2159
    %v2161 = vsel %vm164, %v2157, 0.0
    %2162 = vadd.xlane.f32.xlu0 %v2161
    %v2163 = vpop.xlane.xlu0 %2162
    %v2164 = vmul.f32 %v2160, %v171
    %v2165 = vmul.f32 %v2163, %v171
    %v2166 = vadd.f32 %v2164, 1e-05
    %v2167 = vadd.f32 %v2165, 1e-05
    %v2168 = vrsqrt.pop %v2166
    %v2169 = vrsqrt.pop %v2167
    %v2170 = vmul.f32 %v2154, %v2168
    %v2171 = vmul.f32 %v2155, %v2169
    %2173 = vrot.lane.b32.xlu0 %v2030, 64
    %v2174 = vpop.permute.xlu0 %2173
    %v2176 = vmul.f32 %v2170, %v2174
    %v2177 = vmul.f32 %v2171, %v2174
    %v2178 = vlaneseq
    %v2179 = vshrl.u32 %v2178, 7
    %v2180 = vsub.s32 0, %v2179
    %v2181 = vrot.slane %v1316, %v2180
    %v2182 = vadd.f32 %v2176, %v2181
    %v2183 = vadd.f32 %v2177, %v2181
    %v2184 = vld [vmem:[%s1357 + $0x10] sm:$0xff]
    %v2185 = vld [vmem:[%s1357 + $0x28] sm:$0xff]
    %v2186 = vld [vmem:[%s1357 + $0x40] sm:$0xff]
    %v2187 = vld [vmem:[%s1357 + $0x58] sm:$0xff]
    %v2188 = vld [vmem:[%s1357 + $0x70] sm:$0xff]
    %v2189 = vld [vmem:[%s1357 + $0x88] sm:$0xff]
    %v2190 = vld [vmem:[%s1357 + $0xa0] sm:$0xff]
    %v2191 = vld [vmem:[%s1357 + $0xb8] sm:$0xff]
    %v2193 = vlaneseq
    %v2194 = vshrl.u32 %v2193, 7
    %v2195 = vsub.s32 0, %v2194
    %v2196 = vrot.slane %v1317, %v2195
    %v2197 = vlaneseq
    %v2198 = vshrl.u32 %v2197, 7
    %v2199 = vsub.s32 2, %v2198
    %v2200 = vrot.slane %v1317, %v2199
    %v2203 = vlaneseq
    %v2204 = vshrl.u32 %v2203, 7
    %v2205 = vsub.s32 0, %v2204
    %v2206 = vrot.slane %v2196, %v2205
    %v2207 = vlaneseq
    %v2208 = vshrl.u32 %v2207, 7
    %v2209 = vsub.s32 0, %v2208
    %v2210 = vrot.slane %v2200, %v2209
    %2213 = vrot.lane.b32.xlu0 %v2206, 64
    %v2214 = vpop.permute.xlu0 %2213
    %2215 = vrot.lane.b32.xlu0 %v2210, 64
    %v2216 = vpop.permute.xlu0 %2215
    %v2217 = vsel %vm164, %v2214, %v2216
    %v2220 = vsel %vm164, %v2182, 0
    %v2223 = vsel %vm164, %v2183, 0
    %2225 = vmatprep.subr.mxu0 0.0
    %2226 = vmatpush1.msra.mxu0 %v2184
    %2227 = vmatprep.subr.mxu0 0.0
    %2228 = vmatpush1.msra.mxu0 %v2185
    %2229 = vmatprep.subr.mxu0 0.0
    %2230 = vmatpush1.msra.mxu0 %v2186
    %2231 = vmatprep.subr.mxu0 0.0
    %2232 = vmatpush1.msra.mxu0 %v2187
    %2233 = vmatprep.subr.mxu0 0.0
    %2234 = vmatpush1.msra.mxu0 %v2188
    %2235 = vmatprep.subr.mxu0 0.0
    %2236 = vmatpush1.msra.mxu0 %v2189
    %2237 = vmatprep.subr.mxu0 0.0
    %2238 = vmatpush1.msra.mxu0 %v2190
    %2239 = vmatprep.subr.mxu0 0.0
    %2240 = vmatpush1.msra.mxu0 %v2191
    %2241 = vmatprep.subr.mxu0 0.0
    %2242 = vmatpush1.msra.mxu0 0.0
    %2243 = vmatprep.subr.mxu0 0.0
    %2244 = vmatpush1.msra.mxu0 0.0
    %2245 = vmatprep.subr.mxu0 0.0
    %2246 = vmatpush1.msra.mxu0 0.0
    %2247 = vmatprep.subr.mxu0 0.0
    %2248 = vmatpush1.msra.mxu0 0.0
    %2249 = vmatprep.subr.mxu0 0.0
    %2250 = vmatpush1.msra.mxu0 0.0
    %2251 = vmatprep.subr.mxu0 0.0
    %2252 = vmatpush1.msra.mxu0 0.0
    %2253 = vmatprep.subr.mxu0 0.0
    %2254 = vmatpush1.msra.mxu0 0.0
    %2255 = vmatprep.subr.mxu0 0.0
    %2256 = vmatpush1.msra.mxu0 0.0
    %2257 = vmatprep.subr.mxu0 0.0
    %2258 = vmatpush1.msra.mxu0 0.0
    %2259 = vmatprep.subr.mxu0 0.0
    %2260 = vmatpush1.msra.mxu0 0.0
    %2261 = vmatprep.subr.mxu0 0.0
    %2262 = vmatpush1.msra.mxu0 0.0
    %2263 = vmatprep.subr.mxu0 0.0
    %2264 = vmatpush1.msra.mxu0 0.0
    %2265 = vmatprep.subr.mxu0 0.0
    %2266 = vmatpush1.msra.mxu0 0.0
    %2267 = vmatprep.subr.mxu0 0.0
    %2268 = vmatpush1.msra.mxu0 0.0
    %2269 = vmatprep.subr.mxu0 0.0
    %2270 = vmatpush1.msra.mxu0 0.0
    %2271 = vmatprep.subr.mxu0 0.0
    %2272 = vmatpush1.msra.mxu0 0.0
    %2273 = vmatprep.subr.mxu0 0.0
    %2274 = vmatpush1.msra.mxu0 0.0
    %2275 = vmatprep.subr.mxu0 0.0
    %2276 = vmatpush1.msra.mxu0 0.0
    %2277 = vmatprep.subr.mxu0 0.0
    %2278 = vmatpush1.msra.mxu0 0.0
    %2279 = vmatprep.subr.mxu0 0.0
    %2280 = vmatpush1.msra.mxu0 0.0
    %2281 = vmatprep.subr.mxu0 0.0
    %2282 = vmatpush1.msra.mxu0 0.0
    %2283 = vmatprep.subr.mxu0 0.0
    %2284 = vmatpush1.msra.mxu0 0.0
    %2285 = vmatprep.subr.mxu0 0.0
    %2286 = vmatpush1.msra.mxu0 0.0
    %2287 = vmatprep.subr.mxu0 0.0
    %2288 = vmatpush1.msra.mxu0 0.0
    %2289 = vmatprep.mubr.f32.mxu0 0.0
    %2290 = vmatmul.mubr.f32.gmra.mrb[0].mxu0 %v2220
    %v2291 = vpop.f32.mrb[0].mxu0
    %v2292 = vadd.f32 %v2217, %v2291
    %v2293 = vpop.f32.mrb[0].mxu0
    %2294 = vmatprep.mubr.f32.mxu0 0.0
    %2295 = vmatmul.mubr.f32.gmra.mrb[0].mxu0 %v2223
    %v2296 = vpop.f32.mrb[0].mxu0
    %v2297 = vadd.f32 %v2217, %v2296
    %v2298 = vpop.f32.mrb[0].mxu0
    %2299 = vdwg.mxu0
    %v2300 = vmax.f32 %v2292, 0.0
    %v2301 = vmax.f32 %v2297, 0.0
    %s2302 = scalar_lea.vmem %s6, 128
    %v2303 = vld [vmem:[%s2302] sm:$0xff]
    %v2304 = vld [vmem:[%s2302 + $0x8] sm:$0xff]
    %v2305 = vld [vmem:[%s2302 + $0x10] sm:$0xff]
    %v2306 = vld [vmem:[%s2302 + $0x18] sm:$0xff]
    %v2307 = vld [vmem:[%s2302 + $0x20] sm:$0xff]
    %v2308 = vld [vmem:[%s2302 + $0x28] sm:$0xff]
    %v2309 = vld [vmem:[%s2302 + $0x30] sm:$0xff]
    %v2310 = vld [vmem:[%s2302 + $0x38] sm:$0xff]
    %v2311 = vld [vmem:[%s2302 + $0x40] sm:$0xff]
    %v2312 = vld [vmem:[%s2302 + $0x48] sm:$0xff]
    %v2313 = vld [vmem:[%s2302 + $0x50] sm:$0xff]
    %v2314 = vld [vmem:[%s2302 + $0x58] sm:$0xff]
    %v2315 = vld [vmem:[%s2302 + $0x60] sm:$0xff]
    %v2316 = vld [vmem:[%s2302 + $0x68] sm:$0xff]
    %v2317 = vld [vmem:[%s2302 + $0x70] sm:$0xff]
    %v2318 = vld [vmem:[%s2302 + $0x78] sm:$0xff]
    %v2319 = vlaneseq
    %v2320 = vshrl.u32 %v2319, 7
    %v2321 = vsub.s32 0, %v2320
    %v2322 = vrot.slane %v1318, %v2321
    %2324 = vrot.lane.b32.xlu0 %v2322, 64
    %v2325 = vpop.permute.xlu0 %2324
    %2327 = vmatprep.subr.mxu0 0.0
    %2328 = vmatpush1.msra.mxu0 %v2303
    %2329 = vmatprep.subr.mxu0 0.0
    %2330 = vmatpush1.msra.mxu0 %v2304
    %2331 = vmatprep.subr.mxu0 0.0
    %2332 = vmatpush1.msra.mxu0 %v2305
    %2333 = vmatprep.subr.mxu0 0.0
    %2334 = vmatpush1.msra.mxu0 %v2306
    %2335 = vmatprep.subr.mxu0 0.0
    %2336 = vmatpush1.msra.mxu0 %v2307
    %2337 = vmatprep.subr.mxu0 0.0
    %2338 = vmatpush1.msra.mxu0 %v2308
    %2339 = vmatprep.subr.mxu0 0.0
    %2340 = vmatpush1.msra.mxu0 %v2309
    %2341 = vmatprep.subr.mxu0 0.0
    %2342 = vmatpush1.msra.mxu0 %v2310
    %2343 = vmatprep.subr.mxu0 0.0
    %2344 = vmatpush1.msra.mxu0 %v2311
    %2345 = vmatprep.subr.mxu0 0.0
    %2346 = vmatpush1.msra.mxu0 %v2312
    %2347 = vmatprep.subr.mxu0 0.0
    %2348 = vmatpush1.msra.mxu0 %v2313
    %2349 = vmatprep.subr.mxu0 0.0
    %2350 = vmatpush1.msra.mxu0 %v2314
    %2351 = vmatprep.subr.mxu0 0.0
    %2352 = vmatpush1.msra.mxu0 %v2315
    %2353 = vmatprep.subr.mxu0 0.0
    %2354 = vmatpush1.msra.mxu0 %v2316
    %2355 = vmatprep.subr.mxu0 0.0
    %2356 = vmatpush1.msra.mxu0 %v2317
    %2357 = vmatprep.subr.mxu0 0.0
    %2358 = vmatpush1.msra.mxu0 %v2318
    %2359 = vmatprep.subr.mxu0 0.0
    %2360 = vmatpush1.msra.mxu0 0.0
    %2361 = vmatprep.subr.mxu0 0.0
    %2362 = vmatpush1.msra.mxu0 0.0
    %2363 = vmatprep.subr.mxu0 0.0
    %2364 = vmatpush1.msra.mxu0 0.0
    %2365 = vmatprep.subr.mxu0 0.0
    %2366 = vmatpush1.msra.mxu0 0.0
    %2367 = vmatprep.subr.mxu0 0.0
    %2368 = vmatpush1.msra.mxu0 0.0
    %2369 = vmatprep.subr.mxu0 0.0
    %2370 = vmatpush1.msra.mxu0 0.0
    %2371 = vmatprep.subr.mxu0 0.0
    %2372 = vmatpush1.msra.mxu0 0.0
    %2373 = vmatprep.subr.mxu0 0.0
    %2374 = vmatpush1.msra.mxu0 0.0
    %2375 = vmatprep.subr.mxu0 0.0
    %2376 = vmatpush1.msra.mxu0 0.0
    %2377 = vmatprep.subr.mxu0 0.0
    %2378 = vmatpush1.msra.mxu0 0.0
    %2379 = vmatprep.subr.mxu0 0.0
    %2380 = vmatpush1.msra.mxu0 0.0
    %2381 = vmatprep.subr.mxu0 0.0
    %2382 = vmatpush1.msra.mxu0 0.0
    %2383 = vmatprep.subr.mxu0 0.0
    %2384 = vmatpush1.msra.mxu0 0.0
    %2385 = vmatprep.subr.mxu0 0.0
    %2386 = vmatpush1.msra.mxu0 0.0
    %2387 = vmatprep.subr.mxu0 0.0
    %2388 = vmatpush1.msra.mxu0 0.0
    %2389 = vmatprep.subr.mxu0 0.0
    %2390 = vmatpush1.msra.mxu0 0.0
    %2391 = vmatprep.mubr.f32.mxu0 0.0
    %2392 = vmatmul.mubr.f32.gmra.mrb[0].mxu0 %v2300
    %v2393 = vpop.f32.mrb[0].mxu0
    %v2394 = vadd.f32 %v2325, %v2393
    %v2395 = vpop.f32.mrb[0].mxu0
    %2396 = vmatprep.mubr.f32.mxu0 0.0
    %2397 = vmatmul.mubr.f32.gmra.mrb[0].mxu0 %v2301
    %v2398 = vpop.f32.mrb[0].mxu0
    %v2399 = vadd.f32 %v2325, %v2398
    %v2400 = vpop.f32.mrb[0].mxu0
    %2401 = vdwg.mxu0
    %v2402 = vadd.f32 %v2144, %v2394
    %v2403 = vadd.f32 %v2145, %v2399
    %2404 = vst.msk [vmem:[#allocation2] sm:$0xff] %vm164, %v2402
    %2405 = vst.msk [vmem:[#allocation2 + $0x8] sm:$0xff] %vm164, %v2403
    // Predicated region
    $region30: #{tpu_custom_call.1} parent=1 // pred_check
      _
    $region31: #{tpu_custom_call.1} parent=1 // pred_check_branch
      %2407 = sbr.rel (0) target = $region33
    $region32: #{tpu_custom_call.1} parent=1 // pred_region
      %s2409 = ssub.s32 256, 256
      %2410 = vsyncadd [#allocation3], %s2409
      %s2411 = sshll.u32 [#allocation2], 4
      %s2412 = int_to_ptr.vmem [resolvable:$true] %s2411
      %2417 = dma.vmem_to_hbm [thread:$0]  %s2412, 256, %s7, [#allocation3], 128, 128, 8
    $region33: #{tpu_custom_call.1} parent=1 // pred_fallthru
      _
    // Predicated region
    $region34: #{tpu_custom_call.1} parent=1 // pred_check
      _
    $region35: #{tpu_custom_call.1} parent=1 // pred_check_branch
      %2419 = sbr.rel (0) target = $region37
    $region36: #{tpu_custom_call.1} parent=1 // pred_region
      %2420 = dma.done [#allocation3], 256
    $region37: #{tpu_custom_call.1} parent=1 // pred_fallthru
      _
    %2421 = vsyncpa [#allocation3], 1

</llo_original>
